<compile_context>
chip_gen: v6e
topology: v6e:2x2x1
jax: 0.10.0
libtpu: 0.0.40
codegen_flags: <defaults>
</compile_context>

<pallas_src>
import jax
import jax.numpy as jnp
from jax.experimental import pallas as pl
from jax.experimental.pallas import tpu as pltpu

C1 = 0.01 ** 2
C2 = 0.03 ** 2


def _vmem_capacity_bytes():
    try:
        return int(pltpu.get_tpu_info().vmem_capacity_bytes)
    except Exception:
        return 64 * 1024 * 1024          # conservative fallback (v7x per-TC VMEM)


def _plan_plane_tiling(P, H, W, itemsize):
    """Pick (Pblk, num_blocks, P_pad) for the 1-D plane grid."""
    # Double-buffered x/y input blocks + output block (pipeline buffers).
    dma_per_plane = 3 * 2 * H * W * itemsize
    # In-kernel f32 temporaries: x, y, xx, yy, xy, roll/partial sums, the five
    # pooled stats and the elementwise epilogue; ~16 live (H, W) f32 arrays.
    tmp_per_plane = 16 * H * W * 4
    per_plane = dma_per_plane + tmp_per_plane

    budget = int(_vmem_capacity_bytes() * 0.55)   # headroom: estimate is rough
    max_pblk = max(1, budget // per_plane)

    min_blocks_vmem = -(-P // max_pblk)
    min_blocks_cores = 2 if P >= 2 else 1         # >= 2 steps for v7x megacore
    nblk = max(min_blocks_vmem, min_blocks_cores)
    pblk = -(-P // nblk)                          # ceil: padding waste < nblk
    p_pad = pblk * nblk
    return pblk, nblk, p_pad


def _make_ssim_kernel(H, W):
    inv9 = 1.0 / 9.0

    def kernel(x_ref, y_ref, o_ref):
        x = x_ref[...].astype(jnp.float32)        # (Pb, H, W): H sublanes, W lanes
        y = y_ref[...].astype(jnp.float32)

        lane = jax.lax.broadcasted_iota(jnp.int32, (1, 1, W), 2)
        sub = jax.lax.broadcasted_iota(jnp.int32, (1, H, 1), 1)
        first_lane = lane == 0
        last_lane = lane == (W - 1)
        first_row = sub == 0
        last_row = sub == (H - 1)

        def hsum(a):
            # 3-tap sum along W with ReflectionPad2d(1) boundaries.  Rolls wrap,
            # but both boundary columns are fully overwritten with their exact
            # reflect-pad value, so the roll direction convention is irrelevant.
            s = a + pltpu.roll(a, 1, 2) + pltpu.roll(a, W - 1, 2)
            left = a[:, :, 0:1] + 2.0 * a[:, :, 1:2]
            right = a[:, :, W - 1:W] + 2.0 * a[:, :, W - 2:W - 1]
            s = jnp.where(first_lane, left, s)
            s = jnp.where(last_lane, right, s)
            return s

        def vsum(a):
            # Same 3-tap along H (sublane axis).
            s = a + pltpu.roll(a, 1, 1) + pltpu.roll(a, H - 1, 1)
            top = a[:, 0:1, :] + 2.0 * a[:, 1:2, :]
            bot = a[:, H - 1:H, :] + 2.0 * a[:, H - 2:H - 1, :]
            s = jnp.where(first_row, top, s)
            s = jnp.where(last_row, bot, s)
            return s

        def pool(a):
            return vsum(hsum(a)) * inv9

        # Products computed once; the taps only shift-and-add them.
        xx = x * x
        yy = y * y
        xy = x * y

        mu_x = pool(x)
        mu_y = pool(y)
        sigma_x = pool(xx) - mu_x * mu_x
        sigma_y = pool(yy) - mu_y * mu_y
        sigma_xy = pool(xy) - mu_x * mu_y

        ssim_n = (2.0 * mu_x * mu_y + C1) * (2.0 * sigma_xy + C2)
        ssim_d = (mu_x * mu_x + mu_y * mu_y + C1) * (sigma_x + sigma_y + C2)

        r = pl.reciprocal(ssim_d, approx=True)    # EUP vrcp (ssim_d >= C1*C2 > 0)
        r = r * (2.0 - ssim_d * r)                # one Newton-Raphson refinement
        dist = (1.0 - ssim_n * r) * 0.5
        o_ref[...] = jnp.clip(dist, 0.0, 1.0).astype(o_ref.dtype)

    return kernel


@jax.jit
def ssim_pallas(x, y):
    """x, y: (N, C, H, W). Returns the (N, C, H, W) SSIM distance map."""
    assert x.shape == y.shape
    N, C, H, W = x.shape
    assert H >= 2 and W >= 2, "ReflectionPad2d(1) requires H >= 2 and W >= 2"
    P = N * C

    xs = x.reshape(P, H, W)        # free reshape, no relayout / transpose
    ys = y.reshape(P, H, W)

    pblk, nblk, p_pad = _plan_plane_tiling(P, H, W, x.dtype.itemsize)
    if p_pad != P:
        pad = ((0, p_pad - P), (0, 0), (0, 0))
        xs = jnp.pad(xs, pad)      # zero planes: SSIM(0,0) is finite; cropped below
        ys = jnp.pad(ys, pad)

    vmem_limit = int(_vmem_capacity_bytes() * 0.75)

    out = pl.pallas_call(
        _make_ssim_kernel(H, W),
        out_shape=jax.ShapeDtypeStruct((p_pad, H, W), x.dtype),
        grid_spec=pltpu.PrefetchScalarGridSpec(
            num_scalar_prefetch=0,
            grid=(nblk,),
            in_specs=[
                pl.BlockSpec((pblk, H, W), lambda i: (i, 0, 0)),
                pl.BlockSpec((pblk, H, W), lambda i: (i, 0, 0)),
            ],
            out_specs=pl.BlockSpec((pblk, H, W), lambda i: (i, 0, 0)),
        ),
        compiler_params=pltpu.CompilerParams(
            dimension_semantics=("parallel",),
            vmem_limit_bytes=vmem_limit,
        ),
    )(xs, ys)

    if p_pad != P:
        out = out[:P]
    return out.reshape(N, C, H, W)


def ssim_reference(x, y):
    """Pure-JAX reference matching the PyTorch module."""
    def pad(a):
        return jnp.pad(a, ((0, 0), (0, 0), (1, 1), (1, 1)), mode="reflect")

    def pool(a):
        Hp, Wp = a.shape[2], a.shape[3]
        s = jnp.zeros(a.shape[:2] + (Hp - 2, Wp - 2), a.dtype)
        for di in range(3):
            for dj in range(3):
                s = s + a[:, :, di:di + Hp - 2, dj:dj + Wp - 2]
        return s / 9.0

    xp, yp = pad(x), pad(y)
    mu_x, mu_y = pool(xp), pool(yp)
    sigma_x = pool(xp * xp) - mu_x ** 2
    sigma_y = pool(yp * yp) - mu_y ** 2
    sigma_xy = pool(xp * yp) - mu_x * mu_y
    n = (2 * mu_x * mu_y + C1) * (2 * sigma_xy + C2)
    d = (mu_x ** 2 + mu_y ** 2 + C1) * (sigma_x + sigma_y + C2)
    return jnp.clip((1 - n / d) / 2, 0.0, 1.0)


if __name__ == "__main__":
    key = jax.random.PRNGKey(0)
    kx, ky = jax.random.split(key)
    N, C, H, W = 2, 4, 16, 16
    x = jax.random.uniform(kx, (N, C, H, W), dtype=jnp.float32)
    y = jax.random.uniform(ky, (N, C, H, W), dtype=jnp.float32)

    out = jax.block_until_ready(ssim_pallas(x, y))
    ref = ssim_reference(x, y)

    assert out.shape == (N, C, H, W)
    # Tolerance relaxed to 1e-4 for the approx-reciprocal + single NR step.
    assert jnp.allclose(out, ref, atol=1e-4, rtol=1e-4), float(
        jnp.max(jnp.abs(out - ref)))

    print("KERNEL_OK")
</pallas_src>

<mosaic_0001>
module attributes {stable_mosaic.version = 11 : i64} {
  func.func @kernel(%arg0: i32, %arg1: memref<4x16x16xf32, #tpu.memory_space<vmem>>, %arg2: memref<4x16x16xf32, #tpu.memory_space<vmem>>, %arg3: memref<4x16x16xf32, #tpu.memory_space<vmem>>) attributes {dimension_semantics = [#tpu.dimension_semantics<parallel>], iteration_bounds = array<i64: 2>, scalar_prefetch = 0 : i64, scratch_operands = 0 : i64, tpu.core_type = #tpu.core_type<tc>, window_params = [{transform_indices = @transform_0, window_bounds = array<i64: 4, 16, 16>}, {transform_indices = @transform_1, window_bounds = array<i64: 4, 16, 16>}, {transform_indices = @transform_2, window_bounds = array<i64: 4, 16, 16>}]} {
    %c0 = arith.constant 0 : index
    %c0_0 = arith.constant 0 : index
    %c0_1 = arith.constant 0 : index
    %0 = vector.load %arg1[%c0, %c0_0, %c0_1] : memref<4x16x16xf32, #tpu.memory_space<vmem>>, vector<4x16x16xf32>
    %c0_2 = arith.constant 0 : index
    %c0_3 = arith.constant 0 : index
    %c0_4 = arith.constant 0 : index
    %1 = vector.load %arg2[%c0_2, %c0_3, %c0_4] : memref<4x16x16xf32, #tpu.memory_space<vmem>>, vector<4x16x16xf32>
    %2 = tpu.iota {dimensions = array<i32: 2>} : vector<1x1x16xi32>
    %3 = tpu.iota {dimensions = array<i32: 1>} : vector<1x16x1xi32>
    %c0_i32 = arith.constant 0 : i32
    %4 = vector.broadcast %c0_i32 : i32 to vector<1x1x16xi32>
    %5 = arith.cmpi eq, %2, %4 : vector<1x1x16xi32>
    %c15_i32 = arith.constant 15 : i32
    %6 = vector.broadcast %c15_i32 : i32 to vector<1x1x16xi32>
    %7 = arith.cmpi eq, %2, %6 : vector<1x1x16xi32>
    %c0_i32_5 = arith.constant 0 : i32
    %8 = vector.broadcast %c0_i32_5 : i32 to vector<1x16x1xi32>
    %9 = arith.cmpi eq, %3, %8 : vector<1x16x1xi32>
    %c15_i32_6 = arith.constant 15 : i32
    %10 = vector.broadcast %c15_i32_6 : i32 to vector<1x16x1xi32>
    %11 = arith.cmpi eq, %3, %10 : vector<1x16x1xi32>
    %12 = arith.mulf %0, %0 : vector<4x16x16xf32>
    %13 = arith.mulf %1, %1 : vector<4x16x16xf32>
    %14 = arith.mulf %0, %1 : vector<4x16x16xf32>
    %c1_i32 = arith.constant 1 : i32
    %15 = tpu.dynamic_rotate %0 by %c1_i32 dim 2 : vector<4x16x16xf32>, i32 -> vector<4x16x16xf32>
    %16 = arith.addf %0, %15 : vector<4x16x16xf32>
    %c15_i32_7 = arith.constant 15 : i32
    %17 = tpu.dynamic_rotate %0 by %c15_i32_7 dim 2 : vector<4x16x16xf32>, i32 -> vector<4x16x16xf32>
    %18 = arith.addf %16, %17 : vector<4x16x16xf32>
    %19 = vector.extract_strided_slice %0 {offsets = [0, 0, 0], sizes = [4, 16, 1], strides = [1, 1, 1]} : vector<4x16x16xf32> to vector<4x16x1xf32>
    %20 = vector.extract_strided_slice %0 {offsets = [0, 0, 1], sizes = [4, 16, 1], strides = [1, 1, 1]} : vector<4x16x16xf32> to vector<4x16x1xf32>
    %cst = arith.constant 2.000000e+00 : f32
    %21 = vector.broadcast %cst : f32 to vector<4x16x1xf32>
    %22 = arith.mulf %21, %20 : vector<4x16x1xf32>
    %23 = arith.addf %19, %22 : vector<4x16x1xf32>
    %24 = vector.extract_strided_slice %0 {offsets = [0, 0, 15], sizes = [4, 16, 1], strides = [1, 1, 1]} : vector<4x16x16xf32> to vector<4x16x1xf32>
    %25 = vector.extract_strided_slice %0 {offsets = [0, 0, 14], sizes = [4, 16, 1], strides = [1, 1, 1]} : vector<4x16x16xf32> to vector<4x16x1xf32>
    %cst_8 = arith.constant 2.000000e+00 : f32
    %26 = vector.broadcast %cst_8 : f32 to vector<4x16x1xf32>
    %27 = arith.mulf %26, %25 : vector<4x16x1xf32>
    %28 = arith.addf %24, %27 : vector<4x16x1xf32>
    %29 = vector.shape_cast %5 : vector<1x1x16xi1> to vector<1x1x16xi1>
    %30 = vector.broadcast %29 : vector<1x1x16xi1> to vector<4x16x16xi1>
    %31 = vector.shape_cast %23 : vector<4x16x1xf32> to vector<4x16x1xf32>
    %32 = vector.broadcast %31 : vector<4x16x1xf32> to vector<4x16x16xf32>
    %33 = arith.select %30, %32, %18 : vector<4x16x16xi1>, vector<4x16x16xf32>
    %34 = vector.shape_cast %7 : vector<1x1x16xi1> to vector<1x1x16xi1>
    %35 = vector.broadcast %34 : vector<1x1x16xi1> to vector<4x16x16xi1>
    %36 = vector.shape_cast %28 : vector<4x16x1xf32> to vector<4x16x1xf32>
    %37 = vector.broadcast %36 : vector<4x16x1xf32> to vector<4x16x16xf32>
    %38 = arith.select %35, %37, %33 : vector<4x16x16xi1>, vector<4x16x16xf32>
    %c1_i32_9 = arith.constant 1 : i32
    %39 = tpu.dynamic_rotate %38 by %c1_i32_9 dim 1 : vector<4x16x16xf32>, i32 -> vector<4x16x16xf32>
    %40 = arith.addf %38, %39 : vector<4x16x16xf32>
    %c15_i32_10 = arith.constant 15 : i32
    %41 = tpu.dynamic_rotate %38 by %c15_i32_10 dim 1 : vector<4x16x16xf32>, i32 -> vector<4x16x16xf32>
    %42 = arith.addf %40, %41 : vector<4x16x16xf32>
    %43 = vector.extract_strided_slice %38 {offsets = [0, 0, 0], sizes = [4, 1, 16], strides = [1, 1, 1]} : vector<4x16x16xf32> to vector<4x1x16xf32>
    %44 = vector.extract_strided_slice %38 {offsets = [0, 1, 0], sizes = [4, 1, 16], strides = [1, 1, 1]} : vector<4x16x16xf32> to vector<4x1x16xf32>
    %cst_11 = arith.constant 2.000000e+00 : f32
    %45 = vector.broadcast %cst_11 : f32 to vector<4x1x16xf32>
    %46 = arith.mulf %45, %44 : vector<4x1x16xf32>
    %47 = arith.addf %43, %46 : vector<4x1x16xf32>
    %48 = vector.extract_strided_slice %38 {offsets = [0, 15, 0], sizes = [4, 1, 16], strides = [1, 1, 1]} : vector<4x16x16xf32> to vector<4x1x16xf32>
    %49 = vector.extract_strided_slice %38 {offsets = [0, 14, 0], sizes = [4, 1, 16], strides = [1, 1, 1]} : vector<4x16x16xf32> to vector<4x1x16xf32>
    %cst_12 = arith.constant 2.000000e+00 : f32
    %50 = vector.broadcast %cst_12 : f32 to vector<4x1x16xf32>
    %51 = arith.mulf %50, %49 : vector<4x1x16xf32>
    %52 = arith.addf %48, %51 : vector<4x1x16xf32>
    %53 = vector.shape_cast %9 : vector<1x16x1xi1> to vector<1x16x1xi1>
    %54 = vector.broadcast %53 : vector<1x16x1xi1> to vector<4x16x16xi1>
    %55 = vector.shape_cast %47 : vector<4x1x16xf32> to vector<4x1x16xf32>
    %56 = vector.broadcast %55 : vector<4x1x16xf32> to vector<4x16x16xf32>
    %57 = arith.select %54, %56, %42 : vector<4x16x16xi1>, vector<4x16x16xf32>
    %58 = vector.shape_cast %11 : vector<1x16x1xi1> to vector<1x16x1xi1>
    %59 = vector.broadcast %58 : vector<1x16x1xi1> to vector<4x16x16xi1>
    %60 = vector.shape_cast %52 : vector<4x1x16xf32> to vector<4x1x16xf32>
    %61 = vector.broadcast %60 : vector<4x1x16xf32> to vector<4x16x16xf32>
    %62 = arith.select %59, %61, %57 : vector<4x16x16xi1>, vector<4x16x16xf32>
    %cst_13 = arith.constant 0.111111112 : f32
    %63 = vector.broadcast %cst_13 : f32 to vector<4x16x16xf32>
    %64 = arith.mulf %62, %63 : vector<4x16x16xf32>
    %c1_i32_14 = arith.constant 1 : i32
    %65 = tpu.dynamic_rotate %1 by %c1_i32_14 dim 2 : vector<4x16x16xf32>, i32 -> vector<4x16x16xf32>
    %66 = arith.addf %1, %65 : vector<4x16x16xf32>
    %c15_i32_15 = arith.constant 15 : i32
    %67 = tpu.dynamic_rotate %1 by %c15_i32_15 dim 2 : vector<4x16x16xf32>, i32 -> vector<4x16x16xf32>
    %68 = arith.addf %66, %67 : vector<4x16x16xf32>
    %69 = vector.extract_strided_slice %1 {offsets = [0, 0, 0], sizes = [4, 16, 1], strides = [1, 1, 1]} : vector<4x16x16xf32> to vector<4x16x1xf32>
    %70 = vector.extract_strided_slice %1 {offsets = [0, 0, 1], sizes = [4, 16, 1], strides = [1, 1, 1]} : vector<4x16x16xf32> to vector<4x16x1xf32>
    %cst_16 = arith.constant 2.000000e+00 : f32
    %71 = vector.broadcast %cst_16 : f32 to vector<4x16x1xf32>
    %72 = arith.mulf %71, %70 : vector<4x16x1xf32>
    %73 = arith.addf %69, %72 : vector<4x16x1xf32>
    %74 = vector.extract_strided_slice %1 {offsets = [0, 0, 15], sizes = [4, 16, 1], strides = [1, 1, 1]} : vector<4x16x16xf32> to vector<4x16x1xf32>
    %75 = vector.extract_strided_slice %1 {offsets = [0, 0, 14], sizes = [4, 16, 1], strides = [1, 1, 1]} : vector<4x16x16xf32> to vector<4x16x1xf32>
    %cst_17 = arith.constant 2.000000e+00 : f32
    %76 = vector.broadcast %cst_17 : f32 to vector<4x16x1xf32>
    %77 = arith.mulf %76, %75 : vector<4x16x1xf32>
    %78 = arith.addf %74, %77 : vector<4x16x1xf32>
    %79 = vector.shape_cast %5 : vector<1x1x16xi1> to vector<1x1x16xi1>
    %80 = vector.broadcast %79 : vector<1x1x16xi1> to vector<4x16x16xi1>
    %81 = vector.shape_cast %73 : vector<4x16x1xf32> to vector<4x16x1xf32>
    %82 = vector.broadcast %81 : vector<4x16x1xf32> to vector<4x16x16xf32>
    %83 = arith.select %80, %82, %68 : vector<4x16x16xi1>, vector<4x16x16xf32>
    %84 = vector.shape_cast %7 : vector<1x1x16xi1> to vector<1x1x16xi1>
    %85 = vector.broadcast %84 : vector<1x1x16xi1> to vector<4x16x16xi1>
    %86 = vector.shape_cast %78 : vector<4x16x1xf32> to vector<4x16x1xf32>
    %87 = vector.broadcast %86 : vector<4x16x1xf32> to vector<4x16x16xf32>
    %88 = arith.select %85, %87, %83 : vector<4x16x16xi1>, vector<4x16x16xf32>
    %c1_i32_18 = arith.constant 1 : i32
    %89 = tpu.dynamic_rotate %88 by %c1_i32_18 dim 1 : vector<4x16x16xf32>, i32 -> vector<4x16x16xf32>
    %90 = arith.addf %88, %89 : vector<4x16x16xf32>
    %c15_i32_19 = arith.constant 15 : i32
    %91 = tpu.dynamic_rotate %88 by %c15_i32_19 dim 1 : vector<4x16x16xf32>, i32 -> vector<4x16x16xf32>
    %92 = arith.addf %90, %91 : vector<4x16x16xf32>
    %93 = vector.extract_strided_slice %88 {offsets = [0, 0, 0], sizes = [4, 1, 16], strides = [1, 1, 1]} : vector<4x16x16xf32> to vector<4x1x16xf32>
    %94 = vector.extract_strided_slice %88 {offsets = [0, 1, 0], sizes = [4, 1, 16], strides = [1, 1, 1]} : vector<4x16x16xf32> to vector<4x1x16xf32>
    %cst_20 = arith.constant 2.000000e+00 : f32
    %95 = vector.broadcast %cst_20 : f32 to vector<4x1x16xf32>
    %96 = arith.mulf %95, %94 : vector<4x1x16xf32>
    %97 = arith.addf %93, %96 : vector<4x1x16xf32>
    %98 = vector.extract_strided_slice %88 {offsets = [0, 15, 0], sizes = [4, 1, 16], strides = [1, 1, 1]} : vector<4x16x16xf32> to vector<4x1x16xf32>
    %99 = vector.extract_strided_slice %88 {offsets = [0, 14, 0], sizes = [4, 1, 16], strides = [1, 1, 1]} : vector<4x16x16xf32> to vector<4x1x16xf32>
    %cst_21 = arith.constant 2.000000e+00 : f32
    %100 = vector.broadcast %cst_21 : f32 to vector<4x1x16xf32>
    %101 = arith.mulf %100, %99 : vector<4x1x16xf32>
    %102 = arith.addf %98, %101 : vector<4x1x16xf32>
    %103 = vector.shape_cast %9 : vector<1x16x1xi1> to vector<1x16x1xi1>
    %104 = vector.broadcast %103 : vector<1x16x1xi1> to vector<4x16x16xi1>
    %105 = vector.shape_cast %97 : vector<4x1x16xf32> to vector<4x1x16xf32>
    %106 = vector.broadcast %105 : vector<4x1x16xf32> to vector<4x16x16xf32>
    %107 = arith.select %104, %106, %92 : vector<4x16x16xi1>, vector<4x16x16xf32>
    %108 = vector.shape_cast %11 : vector<1x16x1xi1> to vector<1x16x1xi1>
    %109 = vector.broadcast %108 : vector<1x16x1xi1> to vector<4x16x16xi1>
    %110 = vector.shape_cast %102 : vector<4x1x16xf32> to vector<4x1x16xf32>
    %111 = vector.broadcast %110 : vector<4x1x16xf32> to vector<4x16x16xf32>
    %112 = arith.select %109, %111, %107 : vector<4x16x16xi1>, vector<4x16x16xf32>
    %cst_22 = arith.constant 0.111111112 : f32
    %113 = vector.broadcast %cst_22 : f32 to vector<4x16x16xf32>
    %114 = arith.mulf %112, %113 : vector<4x16x16xf32>
    %c1_i32_23 = arith.constant 1 : i32
    %115 = tpu.dynamic_rotate %12 by %c1_i32_23 dim 2 : vector<4x16x16xf32>, i32 -> vector<4x16x16xf32>
    %116 = arith.addf %12, %115 : vector<4x16x16xf32>
    %c15_i32_24 = arith.constant 15 : i32
    %117 = tpu.dynamic_rotate %12 by %c15_i32_24 dim 2 : vector<4x16x16xf32>, i32 -> vector<4x16x16xf32>
    %118 = arith.addf %116, %117 : vector<4x16x16xf32>
    %119 = vector.extract_strided_slice %12 {offsets = [0, 0, 0], sizes = [4, 16, 1], strides = [1, 1, 1]} : vector<4x16x16xf32> to vector<4x16x1xf32>
    %120 = vector.extract_strided_slice %12 {offsets = [0, 0, 1], sizes = [4, 16, 1], strides = [1, 1, 1]} : vector<4x16x16xf32> to vector<4x16x1xf32>
    %cst_25 = arith.constant 2.000000e+00 : f32
    %121 = vector.broadcast %cst_25 : f32 to vector<4x16x1xf32>
    %122 = arith.mulf %121, %120 : vector<4x16x1xf32>
    %123 = arith.addf %119, %122 : vector<4x16x1xf32>
    %124 = vector.extract_strided_slice %12 {offsets = [0, 0, 15], sizes = [4, 16, 1], strides = [1, 1, 1]} : vector<4x16x16xf32> to vector<4x16x1xf32>
    %125 = vector.extract_strided_slice %12 {offsets = [0, 0, 14], sizes = [4, 16, 1], strides = [1, 1, 1]} : vector<4x16x16xf32> to vector<4x16x1xf32>
    %cst_26 = arith.constant 2.000000e+00 : f32
    %126 = vector.broadcast %cst_26 : f32 to vector<4x16x1xf32>
    %127 = arith.mulf %126, %125 : vector<4x16x1xf32>
    %128 = arith.addf %124, %127 : vector<4x16x1xf32>
    %129 = vector.shape_cast %5 : vector<1x1x16xi1> to vector<1x1x16xi1>
    %130 = vector.broadcast %129 : vector<1x1x16xi1> to vector<4x16x16xi1>
    %131 = vector.shape_cast %123 : vector<4x16x1xf32> to vector<4x16x1xf32>
    %132 = vector.broadcast %131 : vector<4x16x1xf32> to vector<4x16x16xf32>
    %133 = arith.select %130, %132, %118 : vector<4x16x16xi1>, vector<4x16x16xf32>
    %134 = vector.shape_cast %7 : vector<1x1x16xi1> to vector<1x1x16xi1>
    %135 = vector.broadcast %134 : vector<1x1x16xi1> to vector<4x16x16xi1>
    %136 = vector.shape_cast %128 : vector<4x16x1xf32> to vector<4x16x1xf32>
    %137 = vector.broadcast %136 : vector<4x16x1xf32> to vector<4x16x16xf32>
    %138 = arith.select %135, %137, %133 : vector<4x16x16xi1>, vector<4x16x16xf32>
    %c1_i32_27 = arith.constant 1 : i32
    %139 = tpu.dynamic_rotate %138 by %c1_i32_27 dim 1 : vector<4x16x16xf32>, i32 -> vector<4x16x16xf32>
    %140 = arith.addf %138, %139 : vector<4x16x16xf32>
    %c15_i32_28 = arith.constant 15 : i32
    %141 = tpu.dynamic_rotate %138 by %c15_i32_28 dim 1 : vector<4x16x16xf32>, i32 -> vector<4x16x16xf32>
    %142 = arith.addf %140, %141 : vector<4x16x16xf32>
    %143 = vector.extract_strided_slice %138 {offsets = [0, 0, 0], sizes = [4, 1, 16], strides = [1, 1, 1]} : vector<4x16x16xf32> to vector<4x1x16xf32>
    %144 = vector.extract_strided_slice %138 {offsets = [0, 1, 0], sizes = [4, 1, 16], strides = [1, 1, 1]} : vector<4x16x16xf32> to vector<4x1x16xf32>
    %cst_29 = arith.constant 2.000000e+00 : f32
    %145 = vector.broadcast %cst_29 : f32 to vector<4x1x16xf32>
    %146 = arith.mulf %145, %144 : vector<4x1x16xf32>
    %147 = arith.addf %143, %146 : vector<4x1x16xf32>
    %148 = vector.extract_strided_slice %138 {offsets = [0, 15, 0], sizes = [4, 1, 16], strides = [1, 1, 1]} : vector<4x16x16xf32> to vector<4x1x16xf32>
    %149 = vector.extract_strided_slice %138 {offsets = [0, 14, 0], sizes = [4, 1, 16], strides = [1, 1, 1]} : vector<4x16x16xf32> to vector<4x1x16xf32>
    %cst_30 = arith.constant 2.000000e+00 : f32
    %150 = vector.broadcast %cst_30 : f32 to vector<4x1x16xf32>
    %151 = arith.mulf %150, %149 : vector<4x1x16xf32>
    %152 = arith.addf %148, %151 : vector<4x1x16xf32>
    %153 = vector.shape_cast %9 : vector<1x16x1xi1> to vector<1x16x1xi1>
    %154 = vector.broadcast %153 : vector<1x16x1xi1> to vector<4x16x16xi1>
    %155 = vector.shape_cast %147 : vector<4x1x16xf32> to vector<4x1x16xf32>
    %156 = vector.broadcast %155 : vector<4x1x16xf32> to vector<4x16x16xf32>
    %157 = arith.select %154, %156, %142 : vector<4x16x16xi1>, vector<4x16x16xf32>
    %158 = vector.shape_cast %11 : vector<1x16x1xi1> to vector<1x16x1xi1>
    %159 = vector.broadcast %158 : vector<1x16x1xi1> to vector<4x16x16xi1>
    %160 = vector.shape_cast %152 : vector<4x1x16xf32> to vector<4x1x16xf32>
    %161 = vector.broadcast %160 : vector<4x1x16xf32> to vector<4x16x16xf32>
    %162 = arith.select %159, %161, %157 : vector<4x16x16xi1>, vector<4x16x16xf32>
    %cst_31 = arith.constant 0.111111112 : f32
    %163 = vector.broadcast %cst_31 : f32 to vector<4x16x16xf32>
    %164 = arith.mulf %162, %163 : vector<4x16x16xf32>
    %165 = arith.mulf %64, %64 : vector<4x16x16xf32>
    %166 = arith.subf %164, %165 : vector<4x16x16xf32>
    %c1_i32_32 = arith.constant 1 : i32
    %167 = tpu.dynamic_rotate %13 by %c1_i32_32 dim 2 : vector<4x16x16xf32>, i32 -> vector<4x16x16xf32>
    %168 = arith.addf %13, %167 : vector<4x16x16xf32>
    %c15_i32_33 = arith.constant 15 : i32
    %169 = tpu.dynamic_rotate %13 by %c15_i32_33 dim 2 : vector<4x16x16xf32>, i32 -> vector<4x16x16xf32>
    %170 = arith.addf %168, %169 : vector<4x16x16xf32>
    %171 = vector.extract_strided_slice %13 {offsets = [0, 0, 0], sizes = [4, 16, 1], strides = [1, 1, 1]} : vector<4x16x16xf32> to vector<4x16x1xf32>
    %172 = vector.extract_strided_slice %13 {offsets = [0, 0, 1], sizes = [4, 16, 1], strides = [1, 1, 1]} : vector<4x16x16xf32> to vector<4x16x1xf32>
    %cst_34 = arith.constant 2.000000e+00 : f32
    %173 = vector.broadcast %cst_34 : f32 to vector<4x16x1xf32>
    %174 = arith.mulf %173, %172 : vector<4x16x1xf32>
    %175 = arith.addf %171, %174 : vector<4x16x1xf32>
    %176 = vector.extract_strided_slice %13 {offsets = [0, 0, 15], sizes = [4, 16, 1], strides = [1, 1, 1]} : vector<4x16x16xf32> to vector<4x16x1xf32>
    %177 = vector.extract_strided_slice %13 {offsets = [0, 0, 14], sizes = [4, 16, 1], strides = [1, 1, 1]} : vector<4x16x16xf32> to vector<4x16x1xf32>
    %cst_35 = arith.constant 2.000000e+00 : f32
    %178 = vector.broadcast %cst_35 : f32 to vector<4x16x1xf32>
    %179 = arith.mulf %178, %177 : vector<4x16x1xf32>
    %180 = arith.addf %176, %179 : vector<4x16x1xf32>
    %181 = vector.shape_cast %5 : vector<1x1x16xi1> to vector<1x1x16xi1>
    %182 = vector.broadcast %181 : vector<1x1x16xi1> to vector<4x16x16xi1>
    %183 = vector.shape_cast %175 : vector<4x16x1xf32> to vector<4x16x1xf32>
    %184 = vector.broadcast %183 : vector<4x16x1xf32> to vector<4x16x16xf32>
    %185 = arith.select %182, %184, %170 : vector<4x16x16xi1>, vector<4x16x16xf32>
    %186 = vector.shape_cast %7 : vector<1x1x16xi1> to vector<1x1x16xi1>
    %187 = vector.broadcast %186 : vector<1x1x16xi1> to vector<4x16x16xi1>
    %188 = vector.shape_cast %180 : vector<4x16x1xf32> to vector<4x16x1xf32>
    %189 = vector.broadcast %188 : vector<4x16x1xf32> to vector<4x16x16xf32>
    %190 = arith.select %187, %189, %185 : vector<4x16x16xi1>, vector<4x16x16xf32>
    %c1_i32_36 = arith.constant 1 : i32
    %191 = tpu.dynamic_rotate %190 by %c1_i32_36 dim 1 : vector<4x16x16xf32>, i32 -> vector<4x16x16xf32>
    %192 = arith.addf %190, %191 : vector<4x16x16xf32>
    %c15_i32_37 = arith.constant 15 : i32
    %193 = tpu.dynamic_rotate %190 by %c15_i32_37 dim 1 : vector<4x16x16xf32>, i32 -> vector<4x16x16xf32>
    %194 = arith.addf %192, %193 : vector<4x16x16xf32>
    %195 = vector.extract_strided_slice %190 {offsets = [0, 0, 0], sizes = [4, 1, 16], strides = [1, 1, 1]} : vector<4x16x16xf32> to vector<4x1x16xf32>
    %196 = vector.extract_strided_slice %190 {offsets = [0, 1, 0], sizes = [4, 1, 16], strides = [1, 1, 1]} : vector<4x16x16xf32> to vector<4x1x16xf32>
    %cst_38 = arith.constant 2.000000e+00 : f32
    %197 = vector.broadcast %cst_38 : f32 to vector<4x1x16xf32>
    %198 = arith.mulf %197, %196 : vector<4x1x16xf32>
    %199 = arith.addf %195, %198 : vector<4x1x16xf32>
    %200 = vector.extract_strided_slice %190 {offsets = [0, 15, 0], sizes = [4, 1, 16], strides = [1, 1, 1]} : vector<4x16x16xf32> to vector<4x1x16xf32>
    %201 = vector.extract_strided_slice %190 {offsets = [0, 14, 0], sizes = [4, 1, 16], strides = [1, 1, 1]} : vector<4x16x16xf32> to vector<4x1x16xf32>
    %cst_39 = arith.constant 2.000000e+00 : f32
    %202 = vector.broadcast %cst_39 : f32 to vector<4x1x16xf32>
    %203 = arith.mulf %202, %201 : vector<4x1x16xf32>
    %204 = arith.addf %200, %203 : vector<4x1x16xf32>
    %205 = vector.shape_cast %9 : vector<1x16x1xi1> to vector<1x16x1xi1>
    %206 = vector.broadcast %205 : vector<1x16x1xi1> to vector<4x16x16xi1>
    %207 = vector.shape_cast %199 : vector<4x1x16xf32> to vector<4x1x16xf32>
    %208 = vector.broadcast %207 : vector<4x1x16xf32> to vector<4x16x16xf32>
    %209 = arith.select %206, %208, %194 : vector<4x16x16xi1>, vector<4x16x16xf32>
    %210 = vector.shape_cast %11 : vector<1x16x1xi1> to vector<1x16x1xi1>
    %211 = vector.broadcast %210 : vector<1x16x1xi1> to vector<4x16x16xi1>
    %212 = vector.shape_cast %204 : vector<4x1x16xf32> to vector<4x1x16xf32>
    %213 = vector.broadcast %212 : vector<4x1x16xf32> to vector<4x16x16xf32>
    %214 = arith.select %211, %213, %209 : vector<4x16x16xi1>, vector<4x16x16xf32>
    %cst_40 = arith.constant 0.111111112 : f32
    %215 = vector.broadcast %cst_40 : f32 to vector<4x16x16xf32>
    %216 = arith.mulf %214, %215 : vector<4x16x16xf32>
    %217 = arith.mulf %114, %114 : vector<4x16x16xf32>
    %218 = arith.subf %216, %217 : vector<4x16x16xf32>
    %c1_i32_41 = arith.constant 1 : i32
    %219 = tpu.dynamic_rotate %14 by %c1_i32_41 dim 2 : vector<4x16x16xf32>, i32 -> vector<4x16x16xf32>
    %220 = arith.addf %14, %219 : vector<4x16x16xf32>
    %c15_i32_42 = arith.constant 15 : i32
    %221 = tpu.dynamic_rotate %14 by %c15_i32_42 dim 2 : vector<4x16x16xf32>, i32 -> vector<4x16x16xf32>
    %222 = arith.addf %220, %221 : vector<4x16x16xf32>
    %223 = vector.extract_strided_slice %14 {offsets = [0, 0, 0], sizes = [4, 16, 1], strides = [1, 1, 1]} : vector<4x16x16xf32> to vector<4x16x1xf32>
    %224 = vector.extract_strided_slice %14 {offsets = [0, 0, 1], sizes = [4, 16, 1], strides = [1, 1, 1]} : vector<4x16x16xf32> to vector<4x16x1xf32>
    %cst_43 = arith.constant 2.000000e+00 : f32
    %225 = vector.broadcast %cst_43 : f32 to vector<4x16x1xf32>
    %226 = arith.mulf %225, %224 : vector<4x16x1xf32>
    %227 = arith.addf %223, %226 : vector<4x16x1xf32>
    %228 = vector.extract_strided_slice %14 {offsets = [0, 0, 15], sizes = [4, 16, 1], strides = [1, 1, 1]} : vector<4x16x16xf32> to vector<4x16x1xf32>
    %229 = vector.extract_strided_slice %14 {offsets = [0, 0, 14], sizes = [4, 16, 1], strides = [1, 1, 1]} : vector<4x16x16xf32> to vector<4x16x1xf32>
    %cst_44 = arith.constant 2.000000e+00 : f32
    %230 = vector.broadcast %cst_44 : f32 to vector<4x16x1xf32>
    %231 = arith.mulf %230, %229 : vector<4x16x1xf32>
    %232 = arith.addf %228, %231 : vector<4x16x1xf32>
    %233 = vector.shape_cast %5 : vector<1x1x16xi1> to vector<1x1x16xi1>
    %234 = vector.broadcast %233 : vector<1x1x16xi1> to vector<4x16x16xi1>
    %235 = vector.shape_cast %227 : vector<4x16x1xf32> to vector<4x16x1xf32>
    %236 = vector.broadcast %235 : vector<4x16x1xf32> to vector<4x16x16xf32>
    %237 = arith.select %234, %236, %222 : vector<4x16x16xi1>, vector<4x16x16xf32>
    %238 = vector.shape_cast %7 : vector<1x1x16xi1> to vector<1x1x16xi1>
    %239 = vector.broadcast %238 : vector<1x1x16xi1> to vector<4x16x16xi1>
    %240 = vector.shape_cast %232 : vector<4x16x1xf32> to vector<4x16x1xf32>
    %241 = vector.broadcast %240 : vector<4x16x1xf32> to vector<4x16x16xf32>
    %242 = arith.select %239, %241, %237 : vector<4x16x16xi1>, vector<4x16x16xf32>
    %c1_i32_45 = arith.constant 1 : i32
    %243 = tpu.dynamic_rotate %242 by %c1_i32_45 dim 1 : vector<4x16x16xf32>, i32 -> vector<4x16x16xf32>
    %244 = arith.addf %242, %243 : vector<4x16x16xf32>
    %c15_i32_46 = arith.constant 15 : i32
    %245 = tpu.dynamic_rotate %242 by %c15_i32_46 dim 1 : vector<4x16x16xf32>, i32 -> vector<4x16x16xf32>
    %246 = arith.addf %244, %245 : vector<4x16x16xf32>
    %247 = vector.extract_strided_slice %242 {offsets = [0, 0, 0], sizes = [4, 1, 16], strides = [1, 1, 1]} : vector<4x16x16xf32> to vector<4x1x16xf32>
    %248 = vector.extract_strided_slice %242 {offsets = [0, 1, 0], sizes = [4, 1, 16], strides = [1, 1, 1]} : vector<4x16x16xf32> to vector<4x1x16xf32>
    %cst_47 = arith.constant 2.000000e+00 : f32
    %249 = vector.broadcast %cst_47 : f32 to vector<4x1x16xf32>
    %250 = arith.mulf %249, %248 : vector<4x1x16xf32>
    %251 = arith.addf %247, %250 : vector<4x1x16xf32>
    %252 = vector.extract_strided_slice %242 {offsets = [0, 15, 0], sizes = [4, 1, 16], strides = [1, 1, 1]} : vector<4x16x16xf32> to vector<4x1x16xf32>
    %253 = vector.extract_strided_slice %242 {offsets = [0, 14, 0], sizes = [4, 1, 16], strides = [1, 1, 1]} : vector<4x16x16xf32> to vector<4x1x16xf32>
    %cst_48 = arith.constant 2.000000e+00 : f32
    %254 = vector.broadcast %cst_48 : f32 to vector<4x1x16xf32>
    %255 = arith.mulf %254, %253 : vector<4x1x16xf32>
    %256 = arith.addf %252, %255 : vector<4x1x16xf32>
    %257 = vector.shape_cast %9 : vector<1x16x1xi1> to vector<1x16x1xi1>
    %258 = vector.broadcast %257 : vector<1x16x1xi1> to vector<4x16x16xi1>
    %259 = vector.shape_cast %251 : vector<4x1x16xf32> to vector<4x1x16xf32>
    %260 = vector.broadcast %259 : vector<4x1x16xf32> to vector<4x16x16xf32>
    %261 = arith.select %258, %260, %246 : vector<4x16x16xi1>, vector<4x16x16xf32>
    %262 = vector.shape_cast %11 : vector<1x16x1xi1> to vector<1x16x1xi1>
    %263 = vector.broadcast %262 : vector<1x16x1xi1> to vector<4x16x16xi1>
    %264 = vector.shape_cast %256 : vector<4x1x16xf32> to vector<4x1x16xf32>
    %265 = vector.broadcast %264 : vector<4x1x16xf32> to vector<4x16x16xf32>
    %266 = arith.select %263, %265, %261 : vector<4x16x16xi1>, vector<4x16x16xf32>
    %cst_49 = arith.constant 0.111111112 : f32
    %267 = vector.broadcast %cst_49 : f32 to vector<4x16x16xf32>
    %268 = arith.mulf %266, %267 : vector<4x16x16xf32>
    %269 = arith.mulf %64, %114 : vector<4x16x16xf32>
    %270 = arith.subf %268, %269 : vector<4x16x16xf32>
    %cst_50 = arith.constant 2.000000e+00 : f32
    %271 = vector.broadcast %cst_50 : f32 to vector<4x16x16xf32>
    %272 = arith.mulf %271, %64 : vector<4x16x16xf32>
    %273 = arith.mulf %272, %114 : vector<4x16x16xf32>
    %cst_51 = arith.constant 9.99999974E-5 : f32
    %274 = vector.broadcast %cst_51 : f32 to vector<4x16x16xf32>
    %275 = arith.addf %273, %274 : vector<4x16x16xf32>
    %cst_52 = arith.constant 2.000000e+00 : f32
    %276 = vector.broadcast %cst_52 : f32 to vector<4x16x16xf32>
    %277 = arith.mulf %276, %270 : vector<4x16x16xf32>
    %cst_53 = arith.constant 8.99999984E-4 : f32
    %278 = vector.broadcast %cst_53 : f32 to vector<4x16x16xf32>
    %279 = arith.addf %277, %278 : vector<4x16x16xf32>
    %280 = arith.mulf %275, %279 : vector<4x16x16xf32>
    %281 = arith.mulf %64, %64 : vector<4x16x16xf32>
    %282 = arith.mulf %114, %114 : vector<4x16x16xf32>
    %283 = arith.addf %281, %282 : vector<4x16x16xf32>
    %cst_54 = arith.constant 9.99999974E-5 : f32
    %284 = vector.broadcast %cst_54 : f32 to vector<4x16x16xf32>
    %285 = arith.addf %283, %284 : vector<4x16x16xf32>
    %286 = arith.addf %166, %218 : vector<4x16x16xf32>
    %cst_55 = arith.constant 8.99999984E-4 : f32
    %287 = vector.broadcast %cst_55 : f32 to vector<4x16x16xf32>
    %288 = arith.addf %286, %287 : vector<4x16x16xf32>
    %289 = arith.mulf %285, %288 : vector<4x16x16xf32>
    %290 = tpu.reciprocal %289 {approx = true} : vector<4x16x16xf32> -> vector<4x16x16xf32>
    %291 = arith.mulf %289, %290 : vector<4x16x16xf32>
    %cst_56 = arith.constant 2.000000e+00 : f32
    %292 = vector.broadcast %cst_56 : f32 to vector<4x16x16xf32>
    %293 = arith.subf %292, %291 : vector<4x16x16xf32>
    %294 = arith.mulf %290, %293 : vector<4x16x16xf32>
    %295 = arith.mulf %280, %294 : vector<4x16x16xf32>
    %cst_57 = arith.constant 1.000000e+00 : f32
    %296 = vector.broadcast %cst_57 : f32 to vector<4x16x16xf32>
    %297 = arith.subf %296, %295 : vector<4x16x16xf32>
    %cst_58 = arith.constant 5.000000e-01 : f32
    %298 = vector.broadcast %cst_58 : f32 to vector<4x16x16xf32>
    %299 = arith.mulf %297, %298 : vector<4x16x16xf32>
    %cst_59 = arith.constant 0.000000e+00 : f32
    %cst_60 = arith.constant 1.000000e+00 : f32
    %300 = vector.broadcast %cst_59 : f32 to vector<4x16x16xf32>
    %301 = arith.maximumf %300, %299 : vector<4x16x16xf32>
    %302 = vector.broadcast %cst_60 : f32 to vector<4x16x16xf32>
    %303 = arith.minimumf %302, %301 : vector<4x16x16xf32>
    %c0_61 = arith.constant 0 : index
    %c0_62 = arith.constant 0 : index
    %c0_63 = arith.constant 0 : index
    %304 = vector.load %arg3[%c0_61, %c0_62, %c0_63] : memref<4x16x16xf32, #tpu.memory_space<vmem>>, vector<4x16x16xf32>
    tpu.vector_store %arg3[%c0_61, %c0_62, %c0_63], %303 {strides = array<i32>} : memref<4x16x16xf32, #tpu.memory_space<vmem>>, vector<4x16x16xf32>,
    return
  }
  func.func @transform_0(%arg0: i32) -> (i32, i32, i32) {
    %c0_i32 = arith.constant 0 : i32
    %c0_i32_0 = arith.constant 0 : i32
    %c0_i32_1 = arith.constant 0 : i32
    return %arg0, %c0_i32, %c0_i32_0 : i32, i32, i32
  }
  func.func @transform_1(%arg0: i32) -> (i32, i32, i32) {
    %c0_i32 = arith.constant 0 : i32
    %c0_i32_0 = arith.constant 0 : i32
    %c0_i32_1 = arith.constant 0 : i32
    return %arg0, %c0_i32, %c0_i32_0 : i32, i32, i32
  }
  func.func @transform_2(%arg0: i32) -> (i32, i32, i32) {
    %c0_i32 = arith.constant 0 : i32
    %c0_i32_0 = arith.constant 0 : i32
    %c0_i32_1 = arith.constant 0 : i32
    return %arg0, %c0_i32, %c0_i32_0 : i32, i32, i32
  }
}

</mosaic_0001>

<llo_original>
// kernel: ssim_pallas.1
$region0: #{ssim_pallas.1}
  #allocation0 [shape = 'u32[]', space=smem, size = 0x4, offset = 0x4, fixed_abs, tag = 'smem constant byte address 0x4 - core index']
  #allocation1 [shape = 'u32[144,128]{1,0:T(1,128)}', space=vmem, size = 0x12000, scoped, tag = 'internal scratch']
  %s0 = inlined_call_operand.hbm [shape: f32[8,16,16], index: 0, kind: input, shape index: {}]
  %s1 = inlined_call_operand.hbm [shape: f32[8,16,16], index: 1, kind: input, shape index: {}]
  %s2 = inlined_call_operand.hbm [shape: f32[8,16,16], index: 2, kind: output, shape index: {}]
  %s3 = sld [smem:[#allocation0]]
  $region49: #{ssim_pallas.1} parent=0
    _
  %s5 = ssub.s32 1, %s3
  %s6 = scalar_select 0, %s5, %s3
  $region1: #{ssim_pallas.1} parent=0
    #allocation2 [shape = 'u8[65536]{0}', space=vmem, size = 0x10000, scoped, tag = 'input window, operand 0']
    #allocation3 [shape = 's32[2]{0}', space=sflag, size = 0x8, scoped, tag = 'scoped memory for ssim_pallas.1']
    #allocation4 [shape = 's32[2]{0}', space=sflag, size = 0x8, scoped, tag = 'scoped memory for ssim_pallas.1']
    #allocation5 [shape = 'u8[65536]{0}', space=vmem, size = 0x10000, scoped, tag = 'input window, operand 1']
    #allocation6 [shape = 's32[2]{0}', space=sflag, size = 0x8, scoped, tag = 'scoped memory for ssim_pallas.1']
    #allocation7 [shape = 'u8[65536]{0}', space=vmem, size = 0x10000, scoped, tag = 'output window, operand 0']
    %7 = vsyncpa [#allocation3], 0
    %s8 = scalar_lea.sflag [#allocation3], 1
    %9 = vsyncpa %s8, 0
    %10 = vsyncpa [#allocation6], 0
    %s11 = scalar_lea.sflag [#allocation6], 1
    %12 = vsyncpa %s11, 0
    %13 = vsyncpa [#allocation4], 0
    %s14 = scalar_lea.sflag [#allocation4], 1
    %15 = vsyncpa %s14, 0
    loop: start=0, step=1, limit=4
    $region2: #{ssim_pallas.1} parent=1 // loop_pre_header
      _
    $region3: #{ssim_pallas.1} parent=1 // loop_header
      %s17 = sphi 0, %s21
      %p18 = scmp.ge.s32.totalorder %s17, 4
      %s27 = sphi 0, %s29
      %s30 = sphi 0, %s27
      %s31 = sphi 0, %s30
      %s47 = sphi 0, %s31
      %s53 = sphi 0, %s55
      %s56 = sphi 0, %s53
      %s57 = sphi 0, %s56
      %s73 = sphi 0, %s57
      %s79 = sphi 0, %s81
      %s82 = sphi 0, %s79
      %s83 = sphi 0, %s82
      %s99 = sphi 0, %s83
    $region4: #{ssim_pallas.1} parent=1 // loop_header_branch
      %20 = sbr.rel (%p18) target = $region8
    $region5: #{ssim_pallas.1} parent=1 // loop_body
      %s22 = ssub.s32 %s17, 1
      %s23 = ssub.s32 %s17, 2
      %s24 = sadd.s32 %s17, 1
      %s25 = ssub.s32 %s17, %s24
      %p26 = scmp.eq.s32.totalorder %s25, 0
      %s28 = sadd.s32 %s27, 1
      %s29 = scalar_select %p26, %s27, %s28
      %p32 = pneg %p26
      %p33 = scmp.eq.s32.totalorder %s17, 1
      %p34 = por %p32, %p33
      %p35 = scmp.ne.s32.totalorder %s27, %s30
      %p36 = scmp.eq.s32.totalorder %s17, 0
      %p37 = por %p35, %p36
      %p38 = scmp.ne.s32.totalorder %s27, %s30
      %p39 = scmp.eq.s32.totalorder %s22, 1
      %p40 = por %p38, %p39
      %p41 = scmp.ne.s32.totalorder %s30, %s31
      %p42 = scmp.eq.s32.totalorder %s22, 0
      %p43 = por %p41, %p42
      %p44 = scmp.ne.s32.totalorder %s30, %s31
      %p45 = scmp.eq.s32.totalorder %s23, 1
      %p46 = por %p44, %p45
      %p48 = scmp.ne.s32.totalorder %s31, %s47
      %p49 = scmp.eq.s32.totalorder %s23, 0
      %p50 = por %p48, %p49
      %s51 = ssub.s32 %s17, %s24
      %p52 = scmp.eq.s32.totalorder %s51, 0
      %s54 = sadd.s32 %s53, 1
      %s55 = scalar_select %p52, %s53, %s54
      %p58 = pneg %p52
      %p59 = scmp.eq.s32.totalorder %s17, 1
      %p60 = por %p58, %p59
      %p61 = scmp.ne.s32.totalorder %s53, %s56
      %p62 = scmp.eq.s32.totalorder %s17, 0
      %p63 = por %p61, %p62
      %p64 = scmp.ne.s32.totalorder %s53, %s56
      %p65 = scmp.eq.s32.totalorder %s22, 1
      %p66 = por %p64, %p65
      %p67 = scmp.ne.s32.totalorder %s56, %s57
      %p68 = scmp.eq.s32.totalorder %s22, 0
      %p69 = por %p67, %p68
      %p70 = scmp.ne.s32.totalorder %s56, %s57
      %p71 = scmp.eq.s32.totalorder %s23, 1
      %p72 = por %p70, %p71
      %p74 = scmp.ne.s32.totalorder %s57, %s73
      %p75 = scmp.eq.s32.totalorder %s23, 0
      %p76 = por %p74, %p75
      %s77 = ssub.s32 %s17, %s24
      %p78 = scmp.eq.s32.totalorder %s77, 0
      %s80 = sadd.s32 %s79, 1
      %s81 = scalar_select %p78, %s79, %s80
      %p84 = pneg %p78
      %p85 = scmp.eq.s32.totalorder %s17, 1
      %p86 = por %p84, %p85
      %p87 = scmp.ne.s32.totalorder %s79, %s82
      %p88 = scmp.eq.s32.totalorder %s17, 0
      %p89 = por %p87, %p88
      %p90 = scmp.ne.s32.totalorder %s79, %s82
      %p91 = scmp.eq.s32.totalorder %s22, 1
      %p92 = por %p90, %p91
      %p93 = scmp.ne.s32.totalorder %s82, %s83
      %p94 = scmp.eq.s32.totalorder %s22, 0
      %p95 = por %p93, %p94
      %p96 = scmp.ne.s32.totalorder %s82, %s83
      %p97 = scmp.eq.s32.totalorder %s23, 1
      %p98 = por %p96, %p97
      %p100 = scmp.ne.s32.totalorder %s83, %s99
      %p101 = scmp.eq.s32.totalorder %s23, 0
      %p102 = por %p100, %p101
      %p103 = scmp.le.s32.totalorder 1, %s17
      %p104 = scmp.lt.s32.totalorder %s17, 3
      %p105 = pnand %p103, %p104
      %p106 = pneg %p105
      // Predicated region
      $region9: #{ssim_pallas.1} parent=5 // pred_check
        _
      $region10: #{ssim_pallas.1} parent=5 // pred_check_branch
        %108 = sbr.rel (%p105) target = $region12
      $region11: #{ssim_pallas.1} parent=5 // pred_region
        %s109 = ssub.s32 %s17, 1
      $region12: #{ssim_pallas.1} parent=5 // pred_fallthru
        _
      %p110 = scmp.lt.s32.totalorder %s17, 2
      // Predicated region
      $region13: #{ssim_pallas.1} parent=5 // pred_check
        %p111 = pneg %p110
      $region14: #{ssim_pallas.1} parent=5 // pred_check_branch
        %113 = sbr.rel (%p111) target = $region16
      $region15: #{ssim_pallas.1} parent=5 // pred_region
        // Predicated region
        $region17: #{ssim_pallas.1} parent=15 // pred_check
          %p114 = pneg %p37
        $region18: #{ssim_pallas.1} parent=15 // pred_check_branch
          %116 = sbr.rel (%p114) target = $region20
        $region19: #{ssim_pallas.1} parent=15 // pred_region
          %s117 = sand.u32 %s27, 1
          %s118 = scalar_lea.sflag [#allocation3], %s117
          %s119 = sand.u32 %s27, 1
          %s120 = smul.addr %s119, 64
          %s121 = scalar_lea.vmem [#allocation2], %s120
          %s122 = smul.u32 4, %s17
          %s124 = ssub.s32 1024, 1024
          %125 = vsyncadd %s118, %s124
          %s126 = smul.addr %s122, 2
          %s127 = smul.addr %s126, 128
          %s128 = scalar_lea.hbm %s0, %s127
          %s129 = sshll.u32 %s121, 4
          %s130 = int_to_ptr.vmem [resolvable:$true] %s129
          %135 = dma.hbm_to_vmem [thread:$0]  %s128, 1024, %s130, %s118, 128, 128, 8
        $region20: #{ssim_pallas.1} parent=15 // pred_fallthru
          _
        // Predicated region
        $region21: #{ssim_pallas.1} parent=15 // pred_check
          %p136 = pneg %p63
        $region22: #{ssim_pallas.1} parent=15 // pred_check_branch
          %138 = sbr.rel (%p136) target = $region24
        $region23: #{ssim_pallas.1} parent=15 // pred_region
          %s139 = sand.u32 %s53, 1
          %s140 = scalar_lea.sflag [#allocation6], %s139
          %s141 = sand.u32 %s53, 1
          %s142 = smul.addr %s141, 64
          %s143 = scalar_lea.vmem [#allocation5], %s142
          %s144 = smul.u32 4, %s17
          %s146 = ssub.s32 1024, 1024
          %147 = vsyncadd %s140, %s146
          %s148 = smul.addr %s144, 2
          %s149 = smul.addr %s148, 128
          %s150 = scalar_lea.hbm %s1, %s149
          %s151 = sshll.u32 %s143, 4
          %s152 = int_to_ptr.vmem [resolvable:$true] %s151
          %157 = dma.hbm_to_vmem [thread:$0]  %s150, 1024, %s152, %s140, 128, 128, 8
        $region24: #{ssim_pallas.1} parent=15 // pred_fallthru
          _
      $region16: #{ssim_pallas.1} parent=5 // pred_fallthru
        _
      %p158 = scmp.le.s32.totalorder 1, %s17
      %p159 = scmp.lt.s32.totalorder %s17, 3
      %p160 = pnand %p158, %p159
      %p161 = pneg %p160
      // Predicated region
      $region25: #{ssim_pallas.1} parent=5 // pred_check
        _
      $region26: #{ssim_pallas.1} parent=5 // pred_check_branch
        %163 = sbr.rel (%p160) target = $region28
      $region27: #{ssim_pallas.1} parent=5 // pred_region
        %s164 = ssub.s32 %s17, 1
        %s165 = sand.u32 %s30, 1
        %s166 = scalar_lea.sflag [#allocation3], %s165
        %s167 = sand.u32 %s30, 1
        %s168 = smul.addr %s167, 64
        %s169 = scalar_lea.vmem [#allocation2], %s168
        // Predicated region
        $region29: #{ssim_pallas.1} parent=27 // pred_check
          %p170 = pneg %p43
        $region30: #{ssim_pallas.1} parent=27 // pred_check_branch
          %172 = sbr.rel (%p170) target = $region32
        $region31: #{ssim_pallas.1} parent=27 // pred_region
          %173 = dma.done %s166, 1024
        $region32: #{ssim_pallas.1} parent=27 // pred_fallthru
          _
        %s174 = sand.u32 %s56, 1
        %s175 = scalar_lea.sflag [#allocation6], %s174
        %s176 = sand.u32 %s56, 1
        %s177 = smul.addr %s176, 64
        %s178 = scalar_lea.vmem [#allocation5], %s177
        // Predicated region
        $region33: #{ssim_pallas.1} parent=27 // pred_check
          %p179 = pneg %p69
        $region34: #{ssim_pallas.1} parent=27 // pred_check_branch
          %181 = sbr.rel (%p179) target = $region36
        $region35: #{ssim_pallas.1} parent=27 // pred_region
          %182 = dma.done %s175, 1024
        $region36: #{ssim_pallas.1} parent=27 // pred_fallthru
          _
        %s183 = sand.u32 %s30, 1
        %s184 = scalar_lea.sflag [#allocation3], %s183
        %s185 = sand.u32 %s30, 1
        %s186 = smul.addr %s185, 64
        %s187 = scalar_lea.vmem [#allocation2], %s186
        %p188 = pneg %p43
        %p189 = pneg %p40
        %s190 = sand.u32 %s56, 1
        %s191 = scalar_lea.sflag [#allocation6], %s190
        %s192 = sand.u32 %s56, 1
        %s193 = smul.addr %s192, 64
        %s194 = scalar_lea.vmem [#allocation5], %s193
        %p195 = pneg %p69
        %p196 = pneg %p66
        %p197 = pneg %p95
        %p198 = pneg %p92
        %s199 = sand.u32 %s82, 1
        %s200 = scalar_lea.sflag [#allocation4], %s199
        %s201 = sand.u32 %s82, 1
        %s202 = smul.addr %s201, 64
        %s203 = scalar_lea.vmem [#allocation7], %s202
        %s204 = smul.u32 4, %s22
        %s205 = smul.u32 4, %s22
        %s206 = smul.u32 4, %s22
        %v207 = vld [vmem:[%s169] sm:$0xff]
        %v208 = vld [vmem:[%s169 + $0x8] sm:$0xff]
        %v209 = vld [vmem:[%s169 + $0x10] sm:$0xff]
        %v210 = vld [vmem:[%s169 + $0x18] sm:$0xff]
        %v211 = vld [vmem:[%s169 + $0x20] sm:$0xff]
        %v212 = vld [vmem:[%s169 + $0x28] sm:$0xff]
        %v213 = vld [vmem:[%s169 + $0x30] sm:$0xff]
        %v214 = vld [vmem:[%s169 + $0x38] sm:$0xff]
        %v215 = vld [vmem:[%s178] sm:$0xff]
        %v216 = vld [vmem:[%s178 + $0x8] sm:$0xff]
        %v217 = vld [vmem:[%s178 + $0x10] sm:$0xff]
        %v218 = vld [vmem:[%s178 + $0x18] sm:$0xff]
        %v219 = vld [vmem:[%s178 + $0x20] sm:$0xff]
        %v220 = vld [vmem:[%s178 + $0x28] sm:$0xff]
        %v221 = vld [vmem:[%s178 + $0x30] sm:$0xff]
        %v222 = vld [vmem:[%s178 + $0x38] sm:$0xff]
        %v223 = vlaneseq
        %v224 = vand.u32 %v223, 127
        %v225 = vlaneseq
        %v226 = vshrl.u32 %v225, 7
        %v227 = vadd.s32 %v226, 8
        %vm228 = vcmp.eq.s32.totalorder %v224, 0
        %vm229 = vcmp.eq.s32.totalorder %v224, 15
        %vm230 = vcmp.eq.s32.totalorder %v226, 0
        %vm231 = vcmp.eq.s32.totalorder %v227, 0
        %vm232 = vcmp.eq.s32.totalorder %v226, 15
        %vm233 = vcmp.eq.s32.totalorder %v227, 15
        %v234 = vmul.f32 %v207, %v207
        %v235 = vmul.f32 %v208, %v208
        %v236 = vmul.f32 %v209, %v209
        %v237 = vmul.f32 %v210, %v210
        %v238 = vmul.f32 %v211, %v211
        %v239 = vmul.f32 %v212, %v212
        %v240 = vmul.f32 %v213, %v213
        %v241 = vmul.f32 %v214, %v214
        %v242 = vmul.f32 %v215, %v215
        %v243 = vmul.f32 %v216, %v216
        %v244 = vmul.f32 %v217, %v217
        %v245 = vmul.f32 %v218, %v218
        %v246 = vmul.f32 %v219, %v219
        %v247 = vmul.f32 %v220, %v220
        %v248 = vmul.f32 %v221, %v221
        %v249 = vmul.f32 %v222, %v222
        %v250 = vmul.f32 %v207, %v215
        %v251 = vmul.f32 %v208, %v216
        %v252 = vmul.f32 %v209, %v217
        %v253 = vmul.f32 %v210, %v218
        %v254 = vmul.f32 %v211, %v219
        %v255 = vmul.f32 %v212, %v220
        %v256 = vmul.f32 %v213, %v221
        %v257 = vmul.f32 %v214, %v222
        %vm258 = vcmask 1047680
        %259 = vrot.lane.b32.xlu0 %v207, 16
        %v260 = vpop.permute.xlu0 %259
        %v261 = vsel %vm258, %v260, %v207
        %262 = vrot.lane.b32.xlu0 %v208, 16
        %v263 = vpop.permute.xlu0 %262
        %v264 = vsel %vm258, %v263, %v208
        %265 = vrot.lane.b32.xlu0 %v209, 16
        %v266 = vpop.permute.xlu0 %265
        %v267 = vsel %vm258, %v266, %v209
        %268 = vrot.lane.b32.xlu0 %v210, 16
        %v269 = vpop.permute.xlu0 %268
        %v270 = vsel %vm258, %v269, %v210
        %271 = vrot.lane.b32.xlu0 %v211, 16
        %v272 = vpop.permute.xlu0 %271
        %v273 = vsel %vm258, %v272, %v211
        %274 = vrot.lane.b32.xlu0 %v212, 16
        %v275 = vpop.permute.xlu0 %274
        %v276 = vsel %vm258, %v275, %v212
        %277 = vrot.lane.b32.xlu0 %v213, 16
        %v278 = vpop.permute.xlu0 %277
        %v279 = vsel %vm258, %v278, %v213
        %280 = vrot.lane.b32.xlu0 %v214, 16
        %v281 = vpop.permute.xlu0 %280
        %v282 = vsel %vm258, %v281, %v214
        %283 = vrot.lane.b32.xlu0 %v261, 16
        %v284 = vpop.permute.xlu0 %283
        %285 = vrot.lane.b32.xlu0 %v264, 16
        %v286 = vpop.permute.xlu0 %285
        %287 = vrot.lane.b32.xlu0 %v267, 16
        %v288 = vpop.permute.xlu0 %287
        %289 = vrot.lane.b32.xlu0 %v270, 16
        %v290 = vpop.permute.xlu0 %289
        %291 = vrot.lane.b32.xlu0 %v273, 16
        %v292 = vpop.permute.xlu0 %291
        %293 = vrot.lane.b32.xlu0 %v276, 16
        %v294 = vpop.permute.xlu0 %293
        %295 = vrot.lane.b32.xlu0 %v279, 16
        %v296 = vpop.permute.xlu0 %295
        %297 = vrot.lane.b32.xlu0 %v282, 16
        %v298 = vpop.permute.xlu0 %297
        %v299 = vsel %vm258, %v284, %v207
        %v300 = vsel %vm258, %v286, %v208
        %v301 = vsel %vm258, %v288, %v209
        %v302 = vsel %vm258, %v290, %v210
        %v303 = vsel %vm258, %v292, %v211
        %v304 = vsel %vm258, %v294, %v212
        %v305 = vsel %vm258, %v296, %v213
        %v306 = vsel %vm258, %v298, %v214
        %315 = vrot.lane.b32.xlu0 %v299, 113
        %v316 = vpop.permute.xlu0 %315
        %317 = vrot.lane.b32.xlu0 %v300, 113
        %v318 = vpop.permute.xlu0 %317
        %319 = vrot.lane.b32.xlu0 %v301, 113
        %v320 = vpop.permute.xlu0 %319
        %321 = vrot.lane.b32.xlu0 %v302, 113
        %v322 = vpop.permute.xlu0 %321
        %323 = vrot.lane.b32.xlu0 %v303, 113
        %v324 = vpop.permute.xlu0 %323
        %325 = vrot.lane.b32.xlu0 %v304, 113
        %v326 = vpop.permute.xlu0 %325
        %327 = vrot.lane.b32.xlu0 %v305, 113
        %v328 = vpop.permute.xlu0 %327
        %329 = vrot.lane.b32.xlu0 %v306, 113
        %v330 = vpop.permute.xlu0 %329
        %v339 = vadd.f32 %v207, %v316
        %v340 = vadd.f32 %v208, %v318
        %v341 = vadd.f32 %v209, %v320
        %v342 = vadd.f32 %v210, %v322
        %v343 = vadd.f32 %v211, %v324
        %v344 = vadd.f32 %v212, %v326
        %v345 = vadd.f32 %v213, %v328
        %v346 = vadd.f32 %v214, %v330
        %347 = vrot.lane.b32.xlu0 %v299, 127
        %v348 = vpop.permute.xlu0 %347
        %349 = vrot.lane.b32.xlu0 %v300, 127
        %v350 = vpop.permute.xlu0 %349
        %351 = vrot.lane.b32.xlu0 %v301, 127
        %v352 = vpop.permute.xlu0 %351
        %353 = vrot.lane.b32.xlu0 %v302, 127
        %v354 = vpop.permute.xlu0 %353
        %355 = vrot.lane.b32.xlu0 %v303, 127
        %v356 = vpop.permute.xlu0 %355
        %357 = vrot.lane.b32.xlu0 %v304, 127
        %v358 = vpop.permute.xlu0 %357
        %359 = vrot.lane.b32.xlu0 %v305, 127
        %v360 = vpop.permute.xlu0 %359
        %361 = vrot.lane.b32.xlu0 %v306, 127
        %v362 = vpop.permute.xlu0 %361
        %v371 = vadd.f32 %v339, %v348
        %v372 = vadd.f32 %v340, %v350
        %v373 = vadd.f32 %v341, %v352
        %v374 = vadd.f32 %v342, %v354
        %v375 = vadd.f32 %v343, %v356
        %v376 = vadd.f32 %v344, %v358
        %v377 = vadd.f32 %v345, %v360
        %v378 = vadd.f32 %v346, %v362
        %v379 = vmul.f32 %v207, 2.0
        %v380 = vmul.f32 %v208, 2.0
        %v381 = vmul.f32 %v209, 2.0
        %v382 = vmul.f32 %v210, 2.0
        %v383 = vmul.f32 %v211, 2.0
        %v384 = vmul.f32 %v212, 2.0
        %v385 = vmul.f32 %v213, 2.0
        %v386 = vmul.f32 %v214, 2.0
        %395 = vrot.lane.b32.xlu0 %v379, 127
        %v396 = vpop.permute.xlu0 %395
        %397 = vrot.lane.b32.xlu0 %v380, 127
        %v398 = vpop.permute.xlu0 %397
        %399 = vrot.lane.b32.xlu0 %v381, 127
        %v400 = vpop.permute.xlu0 %399
        %401 = vrot.lane.b32.xlu0 %v382, 127
        %v402 = vpop.permute.xlu0 %401
        %403 = vrot.lane.b32.xlu0 %v383, 127
        %v404 = vpop.permute.xlu0 %403
        %405 = vrot.lane.b32.xlu0 %v384, 127
        %v406 = vpop.permute.xlu0 %405
        %407 = vrot.lane.b32.xlu0 %v385, 127
        %v408 = vpop.permute.xlu0 %407
        %409 = vrot.lane.b32.xlu0 %v386, 127
        %v410 = vpop.permute.xlu0 %409
        %v419 = vadd.f32 %v207, %v396
        %v420 = vadd.f32 %v208, %v398
        %v421 = vadd.f32 %v209, %v400
        %v422 = vadd.f32 %v210, %v402
        %v423 = vadd.f32 %v211, %v404
        %v424 = vadd.f32 %v212, %v406
        %v425 = vadd.f32 %v213, %v408
        %v426 = vadd.f32 %v214, %v410
        %427 = vrot.lane.b32.xlu0 %v379, 1
        %v428 = vpop.permute.xlu0 %427
        %429 = vrot.lane.b32.xlu0 %v380, 1
        %v430 = vpop.permute.xlu0 %429
        %431 = vrot.lane.b32.xlu0 %v381, 1
        %v432 = vpop.permute.xlu0 %431
        %433 = vrot.lane.b32.xlu0 %v382, 1
        %v434 = vpop.permute.xlu0 %433
        %435 = vrot.lane.b32.xlu0 %v383, 1
        %v436 = vpop.permute.xlu0 %435
        %437 = vrot.lane.b32.xlu0 %v384, 1
        %v438 = vpop.permute.xlu0 %437
        %439 = vrot.lane.b32.xlu0 %v385, 1
        %v440 = vpop.permute.xlu0 %439
        %441 = vrot.lane.b32.xlu0 %v386, 1
        %v442 = vpop.permute.xlu0 %441
        %v451 = vadd.f32 %v207, %v428
        %v452 = vadd.f32 %v208, %v430
        %v453 = vadd.f32 %v209, %v432
        %v454 = vadd.f32 %v210, %v434
        %v455 = vadd.f32 %v211, %v436
        %v456 = vadd.f32 %v212, %v438
        %v457 = vadd.f32 %v213, %v440
        %v458 = vadd.f32 %v214, %v442
        %v459 = vsel %vm228, 1, 0
        %vm460 = vcmp.eq.s32.totalorder %v459, 1
        %462 = vset.pattern.permute.xlu0 0
        %463 = vperm.xlu0 %462, %v419
        %v464 = vpop.permute.xlu0 %463
        %467 = vset.pattern.permute.xlu0 0
        %468 = vperm.xlu0 %467, %v420
        %v469 = vpop.permute.xlu0 %468
        %472 = vset.pattern.permute.xlu0 0
        %473 = vperm.xlu0 %472, %v421
        %v474 = vpop.permute.xlu0 %473
        %477 = vset.pattern.permute.xlu0 0
        %478 = vperm.xlu0 %477, %v422
        %v479 = vpop.permute.xlu0 %478
        %482 = vset.pattern.permute.xlu0 0
        %483 = vperm.xlu0 %482, %v423
        %v484 = vpop.permute.xlu0 %483
        %487 = vset.pattern.permute.xlu0 0
        %488 = vperm.xlu0 %487, %v424
        %v489 = vpop.permute.xlu0 %488
        %492 = vset.pattern.permute.xlu0 0
        %493 = vperm.xlu0 %492, %v425
        %v494 = vpop.permute.xlu0 %493
        %497 = vset.pattern.permute.xlu0 0
        %498 = vperm.xlu0 %497, %v426
        %v499 = vpop.permute.xlu0 %498
        %v501 = vsel %vm460, %v464, %v371
        %v502 = vsel %vm460, %v469, %v372
        %v503 = vsel %vm460, %v474, %v373
        %v504 = vsel %vm460, %v479, %v374
        %v505 = vsel %vm460, %v484, %v375
        %v506 = vsel %vm460, %v489, %v376
        %v507 = vsel %vm460, %v494, %v377
        %v508 = vsel %vm460, %v499, %v378
        %v509 = vsel %vm229, 1, 0
        %vm510 = vcmp.eq.s32.totalorder %v509, 1
        %512 = vset.pattern.permute.xlu0 15
        %513 = vperm.xlu0 %512, %v451
        %v514 = vpop.permute.xlu0 %513
        %517 = vset.pattern.permute.xlu0 15
        %518 = vperm.xlu0 %517, %v452
        %v519 = vpop.permute.xlu0 %518
        %522 = vset.pattern.permute.xlu0 15
        %523 = vperm.xlu0 %522, %v453
        %v524 = vpop.permute.xlu0 %523
        %527 = vset.pattern.permute.xlu0 15
        %528 = vperm.xlu0 %527, %v454
        %v529 = vpop.permute.xlu0 %528
        %532 = vset.pattern.permute.xlu0 15
        %533 = vperm.xlu0 %532, %v455
        %v534 = vpop.permute.xlu0 %533
        %537 = vset.pattern.permute.xlu0 15
        %538 = vperm.xlu0 %537, %v456
        %v539 = vpop.permute.xlu0 %538
        %542 = vset.pattern.permute.xlu0 15
        %543 = vperm.xlu0 %542, %v457
        %v544 = vpop.permute.xlu0 %543
        %547 = vset.pattern.permute.xlu0 15
        %548 = vperm.xlu0 %547, %v458
        %v549 = vpop.permute.xlu0 %548
        %v551 = vsel %vm510, %v514, %v501
        %v552 = vsel %vm510, %v519, %v502
        %v553 = vsel %vm510, %v524, %v503
        %v554 = vsel %vm510, %v529, %v504
        %v555 = vsel %vm510, %v534, %v505
        %v556 = vsel %vm510, %v539, %v506
        %v557 = vsel %vm510, %v544, %v507
        %v558 = vsel %vm510, %v549, %v508
        %v559 = vrot.slane %v551, 7
        %v560 = vrot.slane %v553, 7
        %v561 = vrot.slane %v555, 7
        %v562 = vrot.slane %v557, 7
        %v563 = vrot.slane %v552, 7
        %v564 = vrot.slane %v554, 7
        %v565 = vrot.slane %v556, 7
        %v566 = vrot.slane %v558, 7
        %vm567 = vcmp.lt.s32.totalorder %v226, 1
        %v568 = vsel %vm567, %v559, %v563
        %v569 = vsel %vm567, %v560, %v564
        %v570 = vsel %vm567, %v561, %v565
        %v571 = vsel %vm567, %v562, %v566
        %v572 = vsel %vm567, %v563, %v559
        %v573 = vsel %vm567, %v564, %v560
        %v574 = vsel %vm567, %v565, %v561
        %v575 = vsel %vm567, %v566, %v562
        %v576 = vadd.f32 %v551, %v572
        %v577 = vadd.f32 %v552, %v568
        %v578 = vadd.f32 %v553, %v573
        %v579 = vadd.f32 %v554, %v569
        %v580 = vadd.f32 %v555, %v574
        %v581 = vadd.f32 %v556, %v570
        %v582 = vadd.f32 %v557, %v575
        %v583 = vadd.f32 %v558, %v571
        %v584 = vrot.slane %v551, 1
        %v585 = vrot.slane %v553, 1
        %v586 = vrot.slane %v555, 1
        %v587 = vrot.slane %v557, 1
        %v588 = vrot.slane %v552, 1
        %v589 = vrot.slane %v554, 1
        %v590 = vrot.slane %v556, 1
        %v591 = vrot.slane %v558, 1
        %vm592 = vcmp.lt.s32.totalorder %v226, 7
        %v593 = vsel %vm592, %v584, %v588
        %v594 = vsel %vm592, %v585, %v589
        %v595 = vsel %vm592, %v586, %v590
        %v596 = vsel %vm592, %v587, %v591
        %v597 = vsel %vm592, %v588, %v584
        %v598 = vsel %vm592, %v589, %v585
        %v599 = vsel %vm592, %v590, %v586
        %v600 = vsel %vm592, %v591, %v587
        %v601 = vadd.f32 %v576, %v593
        %v602 = vadd.f32 %v577, %v597
        %v603 = vadd.f32 %v578, %v594
        %v604 = vadd.f32 %v579, %v598
        %v605 = vadd.f32 %v580, %v595
        %v606 = vadd.f32 %v581, %v599
        %v607 = vadd.f32 %v582, %v596
        %v608 = vadd.f32 %v583, %v600
        %v609 = vmul.f32 %v551, 2.0
        %v610 = vmul.f32 %v553, 2.0
        %v611 = vmul.f32 %v555, 2.0
        %v612 = vmul.f32 %v557, 2.0
        %v617 = vrot.slane %v609, 1
        %v618 = vrot.slane %v610, 1
        %v619 = vrot.slane %v611, 1
        %v620 = vrot.slane %v612, 1
        %v625 = vadd.f32 %v551, %v617
        %v626 = vadd.f32 %v553, %v618
        %v627 = vadd.f32 %v555, %v619
        %v628 = vadd.f32 %v557, %v620
        %v629 = vmul.f32 %v552, 2.0
        %v630 = vmul.f32 %v554, 2.0
        %v631 = vmul.f32 %v556, 2.0
        %v632 = vmul.f32 %v558, 2.0
        %v637 = vrot.slane %v629, 7
        %v638 = vrot.slane %v630, 7
        %v639 = vrot.slane %v631, 7
        %v640 = vrot.slane %v632, 7
        %v645 = vadd.f32 %v552, %v637
        %v646 = vadd.f32 %v554, %v638
        %v647 = vadd.f32 %v556, %v639
        %v648 = vadd.f32 %v558, %v640
        %v649 = vsel %vm230, 1, 0
        %v650 = vsel %vm231, 1, 0
        %vm651 = vcmp.eq.s32.totalorder %v649, 1
        %vm652 = vcmp.eq.s32.totalorder %v650, 1
        %v653 = vlaneseq
        %v654 = vshrl.u32 %v653, 7
        %v655 = vsub.s32 0, %v654
        %v656 = vrot.slane %v625, %v655
        %v657 = vlaneseq
        %v658 = vshrl.u32 %v657, 7
        %v659 = vsub.s32 0, %v658
        %v660 = vrot.slane %v626, %v659
        %v661 = vlaneseq
        %v662 = vshrl.u32 %v661, 7
        %v663 = vsub.s32 0, %v662
        %v664 = vrot.slane %v627, %v663
        %v665 = vlaneseq
        %v666 = vshrl.u32 %v665, 7
        %v667 = vsub.s32 0, %v666
        %v668 = vrot.slane %v628, %v667
        %v669 = vsel %vm651, %v656, %v601
        %v670 = vsel %vm652, %v656, %v602
        %v671 = vsel %vm651, %v660, %v603
        %v672 = vsel %vm652, %v660, %v604
        %v673 = vsel %vm651, %v664, %v605
        %v674 = vsel %vm652, %v664, %v606
        %v675 = vsel %vm651, %v668, %v607
        %v676 = vsel %vm652, %v668, %v608
        %v677 = vsel %vm232, 1, 0
        %v678 = vsel %vm233, 1, 0
        %vm679 = vcmp.eq.s32.totalorder %v677, 1
        %vm680 = vcmp.eq.s32.totalorder %v678, 1
        %v681 = vlaneseq
        %v682 = vshrl.u32 %v681, 7
        %v683 = vsub.s32 7, %v682
        %v684 = vrot.slane %v645, %v683
        %v685 = vlaneseq
        %v686 = vshrl.u32 %v685, 7
        %v687 = vsub.s32 7, %v686
        %v688 = vrot.slane %v646, %v687
        %v689 = vlaneseq
        %v690 = vshrl.u32 %v689, 7
        %v691 = vsub.s32 7, %v690
        %v692 = vrot.slane %v647, %v691
        %v693 = vlaneseq
        %v694 = vshrl.u32 %v693, 7
        %v695 = vsub.s32 7, %v694
        %v696 = vrot.slane %v648, %v695
        %v697 = vsel %vm679, %v684, %v669
        %v698 = vsel %vm680, %v684, %v670
        %v699 = vsel %vm679, %v688, %v671
        %v700 = vsel %vm680, %v688, %v672
        %v701 = vsel %vm679, %v692, %v673
        %v702 = vsel %vm680, %v692, %v674
        %v703 = vsel %vm679, %v696, %v675
        %v704 = vsel %vm680, %v696, %v676
        %v705 = vmul.f32 %v697, 0.11111111
        %v706 = vmul.f32 %v698, 0.11111111
        %v707 = vmul.f32 %v699, 0.11111111
        %v708 = vmul.f32 %v700, 0.11111111
        %v709 = vmul.f32 %v701, 0.11111111
        %v710 = vmul.f32 %v702, 0.11111111
        %v711 = vmul.f32 %v703, 0.11111111
        %v712 = vmul.f32 %v704, 0.11111111
        %713 = vrot.lane.b32.xlu0 %v215, 16
        %v714 = vpop.permute.xlu0 %713
        %v715 = vsel %vm258, %v714, %v215
        %716 = vrot.lane.b32.xlu0 %v216, 16
        %v717 = vpop.permute.xlu0 %716
        %v718 = vsel %vm258, %v717, %v216
        %719 = vrot.lane.b32.xlu0 %v217, 16
        %v720 = vpop.permute.xlu0 %719
        %v721 = vsel %vm258, %v720, %v217
        %722 = vrot.lane.b32.xlu0 %v218, 16
        %v723 = vpop.permute.xlu0 %722
        %v724 = vsel %vm258, %v723, %v218
        %725 = vrot.lane.b32.xlu0 %v219, 16
        %v726 = vpop.permute.xlu0 %725
        %v727 = vsel %vm258, %v726, %v219
        %728 = vrot.lane.b32.xlu0 %v220, 16
        %v729 = vpop.permute.xlu0 %728
        %v730 = vsel %vm258, %v729, %v220
        %731 = vrot.lane.b32.xlu0 %v221, 16
        %v732 = vpop.permute.xlu0 %731
        %v733 = vsel %vm258, %v732, %v221
        %734 = vrot.lane.b32.xlu0 %v222, 16
        %v735 = vpop.permute.xlu0 %734
        %v736 = vsel %vm258, %v735, %v222
        %737 = vrot.lane.b32.xlu0 %v715, 16
        %v738 = vpop.permute.xlu0 %737
        %739 = vrot.lane.b32.xlu0 %v718, 16
        %v740 = vpop.permute.xlu0 %739
        %741 = vrot.lane.b32.xlu0 %v721, 16
        %v742 = vpop.permute.xlu0 %741
        %743 = vrot.lane.b32.xlu0 %v724, 16
        %v744 = vpop.permute.xlu0 %743
        %745 = vrot.lane.b32.xlu0 %v727, 16
        %v746 = vpop.permute.xlu0 %745
        %747 = vrot.lane.b32.xlu0 %v730, 16
        %v748 = vpop.permute.xlu0 %747
        %749 = vrot.lane.b32.xlu0 %v733, 16
        %v750 = vpop.permute.xlu0 %749
        %751 = vrot.lane.b32.xlu0 %v736, 16
        %v752 = vpop.permute.xlu0 %751
        %v753 = vsel %vm258, %v738, %v215
        %v754 = vsel %vm258, %v740, %v216
        %v755 = vsel %vm258, %v742, %v217
        %v756 = vsel %vm258, %v744, %v218
        %v757 = vsel %vm258, %v746, %v219
        %v758 = vsel %vm258, %v748, %v220
        %v759 = vsel %vm258, %v750, %v221
        %v760 = vsel %vm258, %v752, %v222
        %769 = vrot.lane.b32.xlu0 %v753, 113
        %v770 = vpop.permute.xlu0 %769
        %771 = vrot.lane.b32.xlu0 %v754, 113
        %v772 = vpop.permute.xlu0 %771
        %773 = vrot.lane.b32.xlu0 %v755, 113
        %v774 = vpop.permute.xlu0 %773
        %775 = vrot.lane.b32.xlu0 %v756, 113
        %v776 = vpop.permute.xlu0 %775
        %777 = vrot.lane.b32.xlu0 %v757, 113
        %v778 = vpop.permute.xlu0 %777
        %779 = vrot.lane.b32.xlu0 %v758, 113
        %v780 = vpop.permute.xlu0 %779
        %781 = vrot.lane.b32.xlu0 %v759, 113
        %v782 = vpop.permute.xlu0 %781
        %783 = vrot.lane.b32.xlu0 %v760, 113
        %v784 = vpop.permute.xlu0 %783
        %v793 = vadd.f32 %v215, %v770
        %v794 = vadd.f32 %v216, %v772
        %v795 = vadd.f32 %v217, %v774
        %v796 = vadd.f32 %v218, %v776
        %v797 = vadd.f32 %v219, %v778
        %v798 = vadd.f32 %v220, %v780
        %v799 = vadd.f32 %v221, %v782
        %v800 = vadd.f32 %v222, %v784
        %801 = vrot.lane.b32.xlu0 %v753, 127
        %v802 = vpop.permute.xlu0 %801
        %803 = vrot.lane.b32.xlu0 %v754, 127
        %v804 = vpop.permute.xlu0 %803
        %805 = vrot.lane.b32.xlu0 %v755, 127
        %v806 = vpop.permute.xlu0 %805
        %807 = vrot.lane.b32.xlu0 %v756, 127
        %v808 = vpop.permute.xlu0 %807
        %809 = vrot.lane.b32.xlu0 %v757, 127
        %v810 = vpop.permute.xlu0 %809
        %811 = vrot.lane.b32.xlu0 %v758, 127
        %v812 = vpop.permute.xlu0 %811
        %813 = vrot.lane.b32.xlu0 %v759, 127
        %v814 = vpop.permute.xlu0 %813
        %815 = vrot.lane.b32.xlu0 %v760, 127
        %v816 = vpop.permute.xlu0 %815
        %v825 = vadd.f32 %v793, %v802
        %v826 = vadd.f32 %v794, %v804
        %v827 = vadd.f32 %v795, %v806
        %v828 = vadd.f32 %v796, %v808
        %v829 = vadd.f32 %v797, %v810
        %v830 = vadd.f32 %v798, %v812
        %v831 = vadd.f32 %v799, %v814
        %v832 = vadd.f32 %v800, %v816
        %v833 = vmul.f32 %v215, 2.0
        %v834 = vmul.f32 %v216, 2.0
        %v835 = vmul.f32 %v217, 2.0
        %v836 = vmul.f32 %v218, 2.0
        %v837 = vmul.f32 %v219, 2.0
        %v838 = vmul.f32 %v220, 2.0
        %v839 = vmul.f32 %v221, 2.0
        %v840 = vmul.f32 %v222, 2.0
        %849 = vrot.lane.b32.xlu0 %v833, 127
        %v850 = vpop.permute.xlu0 %849
        %851 = vrot.lane.b32.xlu0 %v834, 127
        %v852 = vpop.permute.xlu0 %851
        %853 = vrot.lane.b32.xlu0 %v835, 127
        %v854 = vpop.permute.xlu0 %853
        %855 = vrot.lane.b32.xlu0 %v836, 127
        %v856 = vpop.permute.xlu0 %855
        %857 = vrot.lane.b32.xlu0 %v837, 127
        %v858 = vpop.permute.xlu0 %857
        %859 = vrot.lane.b32.xlu0 %v838, 127
        %v860 = vpop.permute.xlu0 %859
        %861 = vrot.lane.b32.xlu0 %v839, 127
        %v862 = vpop.permute.xlu0 %861
        %863 = vrot.lane.b32.xlu0 %v840, 127
        %v864 = vpop.permute.xlu0 %863
        %v873 = vadd.f32 %v215, %v850
        %v874 = vadd.f32 %v216, %v852
        %v875 = vadd.f32 %v217, %v854
        %v876 = vadd.f32 %v218, %v856
        %v877 = vadd.f32 %v219, %v858
        %v878 = vadd.f32 %v220, %v860
        %v879 = vadd.f32 %v221, %v862
        %v880 = vadd.f32 %v222, %v864
        %881 = vrot.lane.b32.xlu0 %v833, 1
        %v882 = vpop.permute.xlu0 %881
        %883 = vrot.lane.b32.xlu0 %v834, 1
        %v884 = vpop.permute.xlu0 %883
        %885 = vrot.lane.b32.xlu0 %v835, 1
        %v886 = vpop.permute.xlu0 %885
        %887 = vrot.lane.b32.xlu0 %v836, 1
        %v888 = vpop.permute.xlu0 %887
        %889 = vrot.lane.b32.xlu0 %v837, 1
        %v890 = vpop.permute.xlu0 %889
        %891 = vrot.lane.b32.xlu0 %v838, 1
        %v892 = vpop.permute.xlu0 %891
        %893 = vrot.lane.b32.xlu0 %v839, 1
        %v894 = vpop.permute.xlu0 %893
        %895 = vrot.lane.b32.xlu0 %v840, 1
        %v896 = vpop.permute.xlu0 %895
        %v905 = vadd.f32 %v215, %v882
        %v906 = vadd.f32 %v216, %v884
        %v907 = vadd.f32 %v217, %v886
        %v908 = vadd.f32 %v218, %v888
        %v909 = vadd.f32 %v219, %v890
        %v910 = vadd.f32 %v220, %v892
        %v911 = vadd.f32 %v221, %v894
        %v912 = vadd.f32 %v222, %v896
        %914 = vset.pattern.permute.xlu0 0
        %915 = vperm.xlu0 %914, %v873
        %v916 = vpop.permute.xlu0 %915
        %919 = vset.pattern.permute.xlu0 0
        %920 = vperm.xlu0 %919, %v874
        %v921 = vpop.permute.xlu0 %920
        %924 = vset.pattern.permute.xlu0 0
        %925 = vperm.xlu0 %924, %v875
        %v926 = vpop.permute.xlu0 %925
        %929 = vset.pattern.permute.xlu0 0
        %930 = vperm.xlu0 %929, %v876
        %v931 = vpop.permute.xlu0 %930
        %934 = vset.pattern.permute.xlu0 0
        %935 = vperm.xlu0 %934, %v877
        %v936 = vpop.permute.xlu0 %935
        %939 = vset.pattern.permute.xlu0 0
        %940 = vperm.xlu0 %939, %v878
        %v941 = vpop.permute.xlu0 %940
        %944 = vset.pattern.permute.xlu0 0
        %945 = vperm.xlu0 %944, %v879
        %v946 = vpop.permute.xlu0 %945
        %949 = vset.pattern.permute.xlu0 0
        %950 = vperm.xlu0 %949, %v880
        %v951 = vpop.permute.xlu0 %950
        %v953 = vsel %vm460, %v916, %v825
        %v954 = vsel %vm460, %v921, %v826
        %v955 = vsel %vm460, %v926, %v827
        %v956 = vsel %vm460, %v931, %v828
        %v957 = vsel %vm460, %v936, %v829
        %v958 = vsel %vm460, %v941, %v830
        %v959 = vsel %vm460, %v946, %v831
        %v960 = vsel %vm460, %v951, %v832
        %962 = vset.pattern.permute.xlu0 15
        %963 = vperm.xlu0 %962, %v905
        %v964 = vpop.permute.xlu0 %963
        %967 = vset.pattern.permute.xlu0 15
        %968 = vperm.xlu0 %967, %v906
        %v969 = vpop.permute.xlu0 %968
        %972 = vset.pattern.permute.xlu0 15
        %973 = vperm.xlu0 %972, %v907
        %v974 = vpop.permute.xlu0 %973
        %977 = vset.pattern.permute.xlu0 15
        %978 = vperm.xlu0 %977, %v908
        %v979 = vpop.permute.xlu0 %978
        %982 = vset.pattern.permute.xlu0 15
        %983 = vperm.xlu0 %982, %v909
        %v984 = vpop.permute.xlu0 %983
        %987 = vset.pattern.permute.xlu0 15
        %988 = vperm.xlu0 %987, %v910
        %v989 = vpop.permute.xlu0 %988
        %992 = vset.pattern.permute.xlu0 15
        %993 = vperm.xlu0 %992, %v911
        %v994 = vpop.permute.xlu0 %993
        %997 = vset.pattern.permute.xlu0 15
        %998 = vperm.xlu0 %997, %v912
        %v999 = vpop.permute.xlu0 %998
        %v1001 = vsel %vm510, %v964, %v953
        %v1002 = vsel %vm510, %v969, %v954
        %v1003 = vsel %vm510, %v974, %v955
        %v1004 = vsel %vm510, %v979, %v956
        %v1005 = vsel %vm510, %v984, %v957
        %v1006 = vsel %vm510, %v989, %v958
        %v1007 = vsel %vm510, %v994, %v959
        %v1008 = vsel %vm510, %v999, %v960
        %v1009 = vrot.slane %v1001, 7
        %v1010 = vrot.slane %v1003, 7
        %v1011 = vrot.slane %v1005, 7
        %v1012 = vrot.slane %v1007, 7
        %v1013 = vrot.slane %v1002, 7
        %v1014 = vrot.slane %v1004, 7
        %v1015 = vrot.slane %v1006, 7
        %v1016 = vrot.slane %v1008, 7
        %v1017 = vsel %vm567, %v1009, %v1013
        %v1018 = vsel %vm567, %v1010, %v1014
        %v1019 = vsel %vm567, %v1011, %v1015
        %v1020 = vsel %vm567, %v1012, %v1016
        %v1021 = vsel %vm567, %v1013, %v1009
        %v1022 = vsel %vm567, %v1014, %v1010
        %v1023 = vsel %vm567, %v1015, %v1011
        %v1024 = vsel %vm567, %v1016, %v1012
        %v1025 = vadd.f32 %v1001, %v1021
        %v1026 = vadd.f32 %v1002, %v1017
        %v1027 = vadd.f32 %v1003, %v1022
        %v1028 = vadd.f32 %v1004, %v1018
        %v1029 = vadd.f32 %v1005, %v1023
        %v1030 = vadd.f32 %v1006, %v1019
        %v1031 = vadd.f32 %v1007, %v1024
        %v1032 = vadd.f32 %v1008, %v1020
        %v1033 = vrot.slane %v1001, 1
        %v1034 = vrot.slane %v1003, 1
        %v1035 = vrot.slane %v1005, 1
        %v1036 = vrot.slane %v1007, 1
        %v1037 = vrot.slane %v1002, 1
        %v1038 = vrot.slane %v1004, 1
        %v1039 = vrot.slane %v1006, 1
        %v1040 = vrot.slane %v1008, 1
        %v1041 = vsel %vm592, %v1033, %v1037
        %v1042 = vsel %vm592, %v1034, %v1038
        %v1043 = vsel %vm592, %v1035, %v1039
        %v1044 = vsel %vm592, %v1036, %v1040
        %v1045 = vsel %vm592, %v1037, %v1033
        %v1046 = vsel %vm592, %v1038, %v1034
        %v1047 = vsel %vm592, %v1039, %v1035
        %v1048 = vsel %vm592, %v1040, %v1036
        %v1049 = vadd.f32 %v1025, %v1041
        %v1050 = vadd.f32 %v1026, %v1045
        %v1051 = vadd.f32 %v1027, %v1042
        %v1052 = vadd.f32 %v1028, %v1046
        %v1053 = vadd.f32 %v1029, %v1043
        %v1054 = vadd.f32 %v1030, %v1047
        %v1055 = vadd.f32 %v1031, %v1044
        %v1056 = vadd.f32 %v1032, %v1048
        %v1057 = vmul.f32 %v1001, 2.0
        %v1058 = vmul.f32 %v1003, 2.0
        %v1059 = vmul.f32 %v1005, 2.0
        %v1060 = vmul.f32 %v1007, 2.0
        %v1065 = vrot.slane %v1057, 1
        %v1066 = vrot.slane %v1058, 1
        %v1067 = vrot.slane %v1059, 1
        %v1068 = vrot.slane %v1060, 1
        %v1073 = vadd.f32 %v1001, %v1065
        %v1074 = vadd.f32 %v1003, %v1066
        %v1075 = vadd.f32 %v1005, %v1067
        %v1076 = vadd.f32 %v1007, %v1068
        %v1077 = vmul.f32 %v1002, 2.0
        %v1078 = vmul.f32 %v1004, 2.0
        %v1079 = vmul.f32 %v1006, 2.0
        %v1080 = vmul.f32 %v1008, 2.0
        %v1085 = vrot.slane %v1077, 7
        %v1086 = vrot.slane %v1078, 7
        %v1087 = vrot.slane %v1079, 7
        %v1088 = vrot.slane %v1080, 7
        %v1093 = vadd.f32 %v1002, %v1085
        %v1094 = vadd.f32 %v1004, %v1086
        %v1095 = vadd.f32 %v1006, %v1087
        %v1096 = vadd.f32 %v1008, %v1088
        %v1097 = vlaneseq
        %v1098 = vshrl.u32 %v1097, 7
        %v1099 = vsub.s32 0, %v1098
        %v1100 = vrot.slane %v1073, %v1099
        %v1101 = vlaneseq
        %v1102 = vshrl.u32 %v1101, 7
        %v1103 = vsub.s32 0, %v1102
        %v1104 = vrot.slane %v1074, %v1103
        %v1105 = vlaneseq
        %v1106 = vshrl.u32 %v1105, 7
        %v1107 = vsub.s32 0, %v1106
        %v1108 = vrot.slane %v1075, %v1107
        %v1109 = vlaneseq
        %v1110 = vshrl.u32 %v1109, 7
        %v1111 = vsub.s32 0, %v1110
        %v1112 = vrot.slane %v1076, %v1111
        %v1113 = vsel %vm651, %v1100, %v1049
        %v1114 = vsel %vm652, %v1100, %v1050
        %v1115 = vsel %vm651, %v1104, %v1051
        %v1116 = vsel %vm652, %v1104, %v1052
        %v1117 = vsel %vm651, %v1108, %v1053
        %v1118 = vsel %vm652, %v1108, %v1054
        %v1119 = vsel %vm651, %v1112, %v1055
        %v1120 = vsel %vm652, %v1112, %v1056
        %v1121 = vlaneseq
        %v1122 = vshrl.u32 %v1121, 7
        %v1123 = vsub.s32 7, %v1122
        %v1124 = vrot.slane %v1093, %v1123
        %v1125 = vlaneseq
        %v1126 = vshrl.u32 %v1125, 7
        %v1127 = vsub.s32 7, %v1126
        %v1128 = vrot.slane %v1094, %v1127
        %v1129 = vlaneseq
        %v1130 = vshrl.u32 %v1129, 7
        %v1131 = vsub.s32 7, %v1130
        %v1132 = vrot.slane %v1095, %v1131
        %v1133 = vlaneseq
        %v1134 = vshrl.u32 %v1133, 7
        %v1135 = vsub.s32 7, %v1134
        %v1136 = vrot.slane %v1096, %v1135
        %v1137 = vsel %vm679, %v1124, %v1113
        %v1138 = vsel %vm680, %v1124, %v1114
        %v1139 = vsel %vm679, %v1128, %v1115
        %v1140 = vsel %vm680, %v1128, %v1116
        %v1141 = vsel %vm679, %v1132, %v1117
        %v1142 = vsel %vm680, %v1132, %v1118
        %v1143 = vsel %vm679, %v1136, %v1119
        %v1144 = vsel %vm680, %v1136, %v1120
        %v1145 = vmul.f32 %v1137, 0.11111111
        %v1146 = vmul.f32 %v1138, 0.11111111
        %v1147 = vmul.f32 %v1139, 0.11111111
        %v1148 = vmul.f32 %v1140, 0.11111111
        %v1149 = vmul.f32 %v1141, 0.11111111
        %v1150 = vmul.f32 %v1142, 0.11111111
        %v1151 = vmul.f32 %v1143, 0.11111111
        %v1152 = vmul.f32 %v1144, 0.11111111
        %1153 = vrot.lane.b32.xlu0 %v234, 16
        %v1154 = vpop.permute.xlu0 %1153
        %v1155 = vsel %vm258, %v1154, %v234
        %1156 = vrot.lane.b32.xlu0 %v235, 16
        %v1157 = vpop.permute.xlu0 %1156
        %v1158 = vsel %vm258, %v1157, %v235
        %1159 = vrot.lane.b32.xlu0 %v236, 16
        %v1160 = vpop.permute.xlu0 %1159
        %v1161 = vsel %vm258, %v1160, %v236
        %1162 = vrot.lane.b32.xlu0 %v237, 16
        %v1163 = vpop.permute.xlu0 %1162
        %v1164 = vsel %vm258, %v1163, %v237
        %1165 = vrot.lane.b32.xlu0 %v238, 16
        %v1166 = vpop.permute.xlu0 %1165
        %v1167 = vsel %vm258, %v1166, %v238
        %1168 = vrot.lane.b32.xlu0 %v239, 16
        %v1169 = vpop.permute.xlu0 %1168
        %v1170 = vsel %vm258, %v1169, %v239
        %1171 = vrot.lane.b32.xlu0 %v240, 16
        %v1172 = vpop.permute.xlu0 %1171
        %v1173 = vsel %vm258, %v1172, %v240
        %1174 = vrot.lane.b32.xlu0 %v241, 16
        %v1175 = vpop.permute.xlu0 %1174
        %v1176 = vsel %vm258, %v1175, %v241
        %1177 = vrot.lane.b32.xlu0 %v1155, 16
        %v1178 = vpop.permute.xlu0 %1177
        %1179 = vrot.lane.b32.xlu0 %v1158, 16
        %v1180 = vpop.permute.xlu0 %1179
        %1181 = vrot.lane.b32.xlu0 %v1161, 16
        %v1182 = vpop.permute.xlu0 %1181
        %1183 = vrot.lane.b32.xlu0 %v1164, 16
        %v1184 = vpop.permute.xlu0 %1183
        %1185 = vrot.lane.b32.xlu0 %v1167, 16
        %v1186 = vpop.permute.xlu0 %1185
        %1187 = vrot.lane.b32.xlu0 %v1170, 16
        %v1188 = vpop.permute.xlu0 %1187
        %1189 = vrot.lane.b32.xlu0 %v1173, 16
        %v1190 = vpop.permute.xlu0 %1189
        %1191 = vrot.lane.b32.xlu0 %v1176, 16
        %v1192 = vpop.permute.xlu0 %1191
        %v1193 = vsel %vm258, %v1178, %v234
        %v1194 = vsel %vm258, %v1180, %v235
        %v1195 = vsel %vm258, %v1182, %v236
        %v1196 = vsel %vm258, %v1184, %v237
        %v1197 = vsel %vm258, %v1186, %v238
        %v1198 = vsel %vm258, %v1188, %v239
        %v1199 = vsel %vm258, %v1190, %v240
        %v1200 = vsel %vm258, %v1192, %v241
        %1209 = vrot.lane.b32.xlu0 %v1193, 113
        %v1210 = vpop.permute.xlu0 %1209
        %1211 = vrot.lane.b32.xlu0 %v1194, 113
        %v1212 = vpop.permute.xlu0 %1211
        %1213 = vrot.lane.b32.xlu0 %v1195, 113
        %v1214 = vpop.permute.xlu0 %1213
        %1215 = vrot.lane.b32.xlu0 %v1196, 113
        %v1216 = vpop.permute.xlu0 %1215
        %1217 = vrot.lane.b32.xlu0 %v1197, 113
        %v1218 = vpop.permute.xlu0 %1217
        %1219 = vrot.lane.b32.xlu0 %v1198, 113
        %v1220 = vpop.permute.xlu0 %1219
        %1221 = vrot.lane.b32.xlu0 %v1199, 113
        %v1222 = vpop.permute.xlu0 %1221
        %1223 = vrot.lane.b32.xlu0 %v1200, 113
        %v1224 = vpop.permute.xlu0 %1223
        %v1233 = vadd.f32 %v234, %v1210
        %v1234 = vadd.f32 %v235, %v1212
        %v1235 = vadd.f32 %v236, %v1214
        %v1236 = vadd.f32 %v237, %v1216
        %v1237 = vadd.f32 %v238, %v1218
        %v1238 = vadd.f32 %v239, %v1220
        %v1239 = vadd.f32 %v240, %v1222
        %v1240 = vadd.f32 %v241, %v1224
        %1241 = vrot.lane.b32.xlu0 %v1193, 127
        %v1242 = vpop.permute.xlu0 %1241
        %1243 = vrot.lane.b32.xlu0 %v1194, 127
        %v1244 = vpop.permute.xlu0 %1243
        %1245 = vrot.lane.b32.xlu0 %v1195, 127
        %v1246 = vpop.permute.xlu0 %1245
        %1247 = vrot.lane.b32.xlu0 %v1196, 127
        %v1248 = vpop.permute.xlu0 %1247
        %1249 = vrot.lane.b32.xlu0 %v1197, 127
        %v1250 = vpop.permute.xlu0 %1249
        %1251 = vrot.lane.b32.xlu0 %v1198, 127
        %v1252 = vpop.permute.xlu0 %1251
        %1253 = vrot.lane.b32.xlu0 %v1199, 127
        %v1254 = vpop.permute.xlu0 %1253
        %1255 = vrot.lane.b32.xlu0 %v1200, 127
        %v1256 = vpop.permute.xlu0 %1255
        %v1265 = vadd.f32 %v1233, %v1242
        %v1266 = vadd.f32 %v1234, %v1244
        %v1267 = vadd.f32 %v1235, %v1246
        %v1268 = vadd.f32 %v1236, %v1248
        %v1269 = vadd.f32 %v1237, %v1250
        %v1270 = vadd.f32 %v1238, %v1252
        %v1271 = vadd.f32 %v1239, %v1254
        %v1272 = vadd.f32 %v1240, %v1256
        %v1273 = vmul.f32 %v234, 2.0
        %v1274 = vmul.f32 %v235, 2.0
        %v1275 = vmul.f32 %v236, 2.0
        %v1276 = vmul.f32 %v237, 2.0
        %v1277 = vmul.f32 %v238, 2.0
        %v1278 = vmul.f32 %v239, 2.0
        %v1279 = vmul.f32 %v240, 2.0
        %v1280 = vmul.f32 %v241, 2.0
        %1289 = vrot.lane.b32.xlu0 %v1273, 127
        %v1290 = vpop.permute.xlu0 %1289
        %1291 = vrot.lane.b32.xlu0 %v1274, 127
        %v1292 = vpop.permute.xlu0 %1291
        %1293 = vrot.lane.b32.xlu0 %v1275, 127
        %v1294 = vpop.permute.xlu0 %1293
        %1295 = vrot.lane.b32.xlu0 %v1276, 127
        %v1296 = vpop.permute.xlu0 %1295
        %1297 = vrot.lane.b32.xlu0 %v1277, 127
        %v1298 = vpop.permute.xlu0 %1297
        %1299 = vrot.lane.b32.xlu0 %v1278, 127
        %v1300 = vpop.permute.xlu0 %1299
        %1301 = vrot.lane.b32.xlu0 %v1279, 127
        %v1302 = vpop.permute.xlu0 %1301
        %1303 = vrot.lane.b32.xlu0 %v1280, 127
        %v1304 = vpop.permute.xlu0 %1303
        %v1313 = vadd.f32 %v234, %v1290
        %v1314 = vadd.f32 %v235, %v1292
        %v1315 = vadd.f32 %v236, %v1294
        %v1316 = vadd.f32 %v237, %v1296
        %v1317 = vadd.f32 %v238, %v1298
        %v1318 = vadd.f32 %v239, %v1300
        %v1319 = vadd.f32 %v240, %v1302
        %v1320 = vadd.f32 %v241, %v1304
        %1321 = vrot.lane.b32.xlu0 %v1273, 1
        %v1322 = vpop.permute.xlu0 %1321
        %1323 = vrot.lane.b32.xlu0 %v1274, 1
        %v1324 = vpop.permute.xlu0 %1323
        %1325 = vrot.lane.b32.xlu0 %v1275, 1
        %v1326 = vpop.permute.xlu0 %1325
        %1327 = vrot.lane.b32.xlu0 %v1276, 1
        %v1328 = vpop.permute.xlu0 %1327
        %1329 = vrot.lane.b32.xlu0 %v1277, 1
        %v1330 = vpop.permute.xlu0 %1329
        %1331 = vrot.lane.b32.xlu0 %v1278, 1
        %v1332 = vpop.permute.xlu0 %1331
        %1333 = vrot.lane.b32.xlu0 %v1279, 1
        %v1334 = vpop.permute.xlu0 %1333
        %1335 = vrot.lane.b32.xlu0 %v1280, 1
        %v1336 = vpop.permute.xlu0 %1335
        %v1345 = vadd.f32 %v234, %v1322
        %v1346 = vadd.f32 %v235, %v1324
        %v1347 = vadd.f32 %v236, %v1326
        %v1348 = vadd.f32 %v237, %v1328
        %v1349 = vadd.f32 %v238, %v1330
        %v1350 = vadd.f32 %v239, %v1332
        %v1351 = vadd.f32 %v240, %v1334
        %v1352 = vadd.f32 %v241, %v1336
        %1354 = vset.pattern.permute.xlu0 0
        %1355 = vperm.xlu0 %1354, %v1313
        %v1356 = vpop.permute.xlu0 %1355
        %1359 = vset.pattern.permute.xlu0 0
        %1360 = vperm.xlu0 %1359, %v1314
        %v1361 = vpop.permute.xlu0 %1360
        %1364 = vset.pattern.permute.xlu0 0
        %1365 = vperm.xlu0 %1364, %v1315
        %v1366 = vpop.permute.xlu0 %1365
        %1369 = vset.pattern.permute.xlu0 0
        %1370 = vperm.xlu0 %1369, %v1316
        %v1371 = vpop.permute.xlu0 %1370
        %1374 = vset.pattern.permute.xlu0 0
        %1375 = vperm.xlu0 %1374, %v1317
        %v1376 = vpop.permute.xlu0 %1375
        %1379 = vset.pattern.permute.xlu0 0
        %1380 = vperm.xlu0 %1379, %v1318
        %v1381 = vpop.permute.xlu0 %1380
        %1384 = vset.pattern.permute.xlu0 0
        %1385 = vperm.xlu0 %1384, %v1319
        %v1386 = vpop.permute.xlu0 %1385
        %1389 = vset.pattern.permute.xlu0 0
        %1390 = vperm.xlu0 %1389, %v1320
        %v1391 = vpop.permute.xlu0 %1390
        %v1393 = vsel %vm460, %v1356, %v1265
        %v1394 = vsel %vm460, %v1361, %v1266
        %v1395 = vsel %vm460, %v1366, %v1267
        %v1396 = vsel %vm460, %v1371, %v1268
        %v1397 = vsel %vm460, %v1376, %v1269
        %v1398 = vsel %vm460, %v1381, %v1270
        %v1399 = vsel %vm460, %v1386, %v1271
        %v1400 = vsel %vm460, %v1391, %v1272
        %1402 = vset.pattern.permute.xlu0 15
        %1403 = vperm.xlu0 %1402, %v1345
        %v1404 = vpop.permute.xlu0 %1403
        %1407 = vset.pattern.permute.xlu0 15
        %1408 = vperm.xlu0 %1407, %v1346
        %v1409 = vpop.permute.xlu0 %1408
        %1412 = vset.pattern.permute.xlu0 15
        %1413 = vperm.xlu0 %1412, %v1347
        %v1414 = vpop.permute.xlu0 %1413
        %1417 = vset.pattern.permute.xlu0 15
        %1418 = vperm.xlu0 %1417, %v1348
        %v1419 = vpop.permute.xlu0 %1418
        %1422 = vset.pattern.permute.xlu0 15
        %1423 = vperm.xlu0 %1422, %v1349
        %v1424 = vpop.permute.xlu0 %1423
        %1427 = vset.pattern.permute.xlu0 15
        %1428 = vperm.xlu0 %1427, %v1350
        %v1429 = vpop.permute.xlu0 %1428
        %1432 = vset.pattern.permute.xlu0 15
        %1433 = vperm.xlu0 %1432, %v1351
        %v1434 = vpop.permute.xlu0 %1433
        %1437 = vset.pattern.permute.xlu0 15
        %1438 = vperm.xlu0 %1437, %v1352
        %v1439 = vpop.permute.xlu0 %1438
        %v1441 = vsel %vm510, %v1404, %v1393
        %v1442 = vsel %vm510, %v1409, %v1394
        %v1443 = vsel %vm510, %v1414, %v1395
        %v1444 = vsel %vm510, %v1419, %v1396
        %v1445 = vsel %vm510, %v1424, %v1397
        %v1446 = vsel %vm510, %v1429, %v1398
        %v1447 = vsel %vm510, %v1434, %v1399
        %v1448 = vsel %vm510, %v1439, %v1400
        %v1449 = vrot.slane %v1441, 7
        %v1450 = vrot.slane %v1443, 7
        %v1451 = vrot.slane %v1445, 7
        %v1452 = vrot.slane %v1447, 7
        %v1453 = vrot.slane %v1442, 7
        %v1454 = vrot.slane %v1444, 7
        %v1455 = vrot.slane %v1446, 7
        %v1456 = vrot.slane %v1448, 7
        %v1457 = vsel %vm567, %v1449, %v1453
        %v1458 = vsel %vm567, %v1450, %v1454
        %v1459 = vsel %vm567, %v1451, %v1455
        %v1460 = vsel %vm567, %v1452, %v1456
        %v1461 = vsel %vm567, %v1453, %v1449
        %v1462 = vsel %vm567, %v1454, %v1450
        %v1463 = vsel %vm567, %v1455, %v1451
        %v1464 = vsel %vm567, %v1456, %v1452
        %v1465 = vadd.f32 %v1441, %v1461
        %v1466 = vadd.f32 %v1442, %v1457
        %v1467 = vadd.f32 %v1443, %v1462
        %v1468 = vadd.f32 %v1444, %v1458
        %v1469 = vadd.f32 %v1445, %v1463
        %v1470 = vadd.f32 %v1446, %v1459
        %v1471 = vadd.f32 %v1447, %v1464
        %v1472 = vadd.f32 %v1448, %v1460
        %v1473 = vrot.slane %v1441, 1
        %v1474 = vrot.slane %v1443, 1
        %v1475 = vrot.slane %v1445, 1
        %v1476 = vrot.slane %v1447, 1
        %v1477 = vrot.slane %v1442, 1
        %v1478 = vrot.slane %v1444, 1
        %v1479 = vrot.slane %v1446, 1
        %v1480 = vrot.slane %v1448, 1
        %v1481 = vsel %vm592, %v1473, %v1477
        %v1482 = vsel %vm592, %v1474, %v1478
        %v1483 = vsel %vm592, %v1475, %v1479
        %v1484 = vsel %vm592, %v1476, %v1480
        %v1485 = vsel %vm592, %v1477, %v1473
        %v1486 = vsel %vm592, %v1478, %v1474
        %v1487 = vsel %vm592, %v1479, %v1475
        %v1488 = vsel %vm592, %v1480, %v1476
        %v1489 = vadd.f32 %v1465, %v1481
        %v1490 = vadd.f32 %v1466, %v1485
        %v1491 = vadd.f32 %v1467, %v1482
        %v1492 = vadd.f32 %v1468, %v1486
        %v1493 = vadd.f32 %v1469, %v1483
        %v1494 = vadd.f32 %v1470, %v1487
        %v1495 = vadd.f32 %v1471, %v1484
        %v1496 = vadd.f32 %v1472, %v1488
        %v1497 = vmul.f32 %v1441, 2.0
        %v1498 = vmul.f32 %v1443, 2.0
        %v1499 = vmul.f32 %v1445, 2.0
        %v1500 = vmul.f32 %v1447, 2.0
        %v1505 = vrot.slane %v1497, 1
        %v1506 = vrot.slane %v1498, 1
        %v1507 = vrot.slane %v1499, 1
        %v1508 = vrot.slane %v1500, 1
        %v1513 = vadd.f32 %v1441, %v1505
        %v1514 = vadd.f32 %v1443, %v1506
        %v1515 = vadd.f32 %v1445, %v1507
        %v1516 = vadd.f32 %v1447, %v1508
        %v1517 = vmul.f32 %v1442, 2.0
        %v1518 = vmul.f32 %v1444, 2.0
        %v1519 = vmul.f32 %v1446, 2.0
        %v1520 = vmul.f32 %v1448, 2.0
        %v1525 = vrot.slane %v1517, 7
        %v1526 = vrot.slane %v1518, 7
        %v1527 = vrot.slane %v1519, 7
        %v1528 = vrot.slane %v1520, 7
        %v1533 = vadd.f32 %v1442, %v1525
        %v1534 = vadd.f32 %v1444, %v1526
        %v1535 = vadd.f32 %v1446, %v1527
        %v1536 = vadd.f32 %v1448, %v1528
        %v1537 = vlaneseq
        %v1538 = vshrl.u32 %v1537, 7
        %v1539 = vsub.s32 0, %v1538
        %v1540 = vrot.slane %v1513, %v1539
        %v1541 = vlaneseq
        %v1542 = vshrl.u32 %v1541, 7
        %v1543 = vsub.s32 0, %v1542
        %v1544 = vrot.slane %v1514, %v1543
        %v1545 = vlaneseq
        %v1546 = vshrl.u32 %v1545, 7
        %v1547 = vsub.s32 0, %v1546
        %v1548 = vrot.slane %v1515, %v1547
        %v1549 = vlaneseq
        %v1550 = vshrl.u32 %v1549, 7
        %v1551 = vsub.s32 0, %v1550
        %v1552 = vrot.slane %v1516, %v1551
        %v1553 = vsel %vm651, %v1540, %v1489
        %v1554 = vsel %vm652, %v1540, %v1490
        %v1555 = vsel %vm651, %v1544, %v1491
        %v1556 = vsel %vm652, %v1544, %v1492
        %v1557 = vsel %vm651, %v1548, %v1493
        %v1558 = vsel %vm652, %v1548, %v1494
        %v1559 = vsel %vm651, %v1552, %v1495
        %v1560 = vsel %vm652, %v1552, %v1496
        %v1561 = vlaneseq
        %v1562 = vshrl.u32 %v1561, 7
        %v1563 = vsub.s32 7, %v1562
        %v1564 = vrot.slane %v1533, %v1563
        %v1565 = vlaneseq
        %v1566 = vshrl.u32 %v1565, 7
        %v1567 = vsub.s32 7, %v1566
        %v1568 = vrot.slane %v1534, %v1567
        %v1569 = vlaneseq
        %v1570 = vshrl.u32 %v1569, 7
        %v1571 = vsub.s32 7, %v1570
        %v1572 = vrot.slane %v1535, %v1571
        %v1573 = vlaneseq
        %v1574 = vshrl.u32 %v1573, 7
        %v1575 = vsub.s32 7, %v1574
        %v1576 = vrot.slane %v1536, %v1575
        %v1577 = vsel %vm679, %v1564, %v1553
        %v1578 = vsel %vm680, %v1564, %v1554
        %v1579 = vsel %vm679, %v1568, %v1555
        %v1580 = vsel %vm680, %v1568, %v1556
        %v1581 = vsel %vm679, %v1572, %v1557
        %v1582 = vsel %vm680, %v1572, %v1558
        %v1583 = vsel %vm679, %v1576, %v1559
        %v1584 = vsel %vm680, %v1576, %v1560
        %v1585 = vmul.f32 %v1577, 0.11111111
        %v1586 = vmul.f32 %v1578, 0.11111111
        %v1587 = vmul.f32 %v1579, 0.11111111
        %v1588 = vmul.f32 %v1580, 0.11111111
        %v1589 = vmul.f32 %v1581, 0.11111111
        %v1590 = vmul.f32 %v1582, 0.11111111
        %v1591 = vmul.f32 %v1583, 0.11111111
        %v1592 = vmul.f32 %v1584, 0.11111111
        %v1593 = vmul.f32 %v705, %v705
        %v1594 = vmul.f32 %v706, %v706
        %v1595 = vmul.f32 %v707, %v707
        %v1596 = vmul.f32 %v708, %v708
        %v1597 = vmul.f32 %v709, %v709
        %v1598 = vmul.f32 %v710, %v710
        %v1599 = vmul.f32 %v711, %v711
        %v1600 = vmul.f32 %v712, %v712
        %v1601 = vsub.f32 %v1585, %v1593
        %v1602 = vsub.f32 %v1586, %v1594
        %v1603 = vsub.f32 %v1587, %v1595
        %v1604 = vsub.f32 %v1588, %v1596
        %v1605 = vsub.f32 %v1589, %v1597
        %v1606 = vsub.f32 %v1590, %v1598
        %v1607 = vsub.f32 %v1591, %v1599
        %v1608 = vsub.f32 %v1592, %v1600
        %1609 = vrot.lane.b32.xlu0 %v242, 16
        %v1610 = vpop.permute.xlu0 %1609
        %v1611 = vsel %vm258, %v1610, %v242
        %1612 = vrot.lane.b32.xlu0 %v243, 16
        %v1613 = vpop.permute.xlu0 %1612
        %v1614 = vsel %vm258, %v1613, %v243
        %1615 = vrot.lane.b32.xlu0 %v244, 16
        %v1616 = vpop.permute.xlu0 %1615
        %v1617 = vsel %vm258, %v1616, %v244
        %1618 = vrot.lane.b32.xlu0 %v245, 16
        %v1619 = vpop.permute.xlu0 %1618
        %v1620 = vsel %vm258, %v1619, %v245
        %1621 = vrot.lane.b32.xlu0 %v246, 16
        %v1622 = vpop.permute.xlu0 %1621
        %v1623 = vsel %vm258, %v1622, %v246
        %1624 = vrot.lane.b32.xlu0 %v247, 16
        %v1625 = vpop.permute.xlu0 %1624
        %v1626 = vsel %vm258, %v1625, %v247
        %1627 = vrot.lane.b32.xlu0 %v248, 16
        %v1628 = vpop.permute.xlu0 %1627
        %v1629 = vsel %vm258, %v1628, %v248
        %1630 = vrot.lane.b32.xlu0 %v249, 16
        %v1631 = vpop.permute.xlu0 %1630
        %v1632 = vsel %vm258, %v1631, %v249
        %1633 = vrot.lane.b32.xlu0 %v1611, 16
        %v1634 = vpop.permute.xlu0 %1633
        %1635 = vrot.lane.b32.xlu0 %v1614, 16
        %v1636 = vpop.permute.xlu0 %1635
        %1637 = vrot.lane.b32.xlu0 %v1617, 16
        %v1638 = vpop.permute.xlu0 %1637
        %1639 = vrot.lane.b32.xlu0 %v1620, 16
        %v1640 = vpop.permute.xlu0 %1639
        %1641 = vrot.lane.b32.xlu0 %v1623, 16
        %v1642 = vpop.permute.xlu0 %1641
        %1643 = vrot.lane.b32.xlu0 %v1626, 16
        %v1644 = vpop.permute.xlu0 %1643
        %1645 = vrot.lane.b32.xlu0 %v1629, 16
        %v1646 = vpop.permute.xlu0 %1645
        %1647 = vrot.lane.b32.xlu0 %v1632, 16
        %v1648 = vpop.permute.xlu0 %1647
        %v1649 = vsel %vm258, %v1634, %v242
        %v1650 = vsel %vm258, %v1636, %v243
        %v1651 = vsel %vm258, %v1638, %v244
        %v1652 = vsel %vm258, %v1640, %v245
        %v1653 = vsel %vm258, %v1642, %v246
        %v1654 = vsel %vm258, %v1644, %v247
        %v1655 = vsel %vm258, %v1646, %v248
        %v1656 = vsel %vm258, %v1648, %v249
        %1665 = vrot.lane.b32.xlu0 %v1649, 113
        %v1666 = vpop.permute.xlu0 %1665
        %1667 = vrot.lane.b32.xlu0 %v1650, 113
        %v1668 = vpop.permute.xlu0 %1667
        %1669 = vrot.lane.b32.xlu0 %v1651, 113
        %v1670 = vpop.permute.xlu0 %1669
        %1671 = vrot.lane.b32.xlu0 %v1652, 113
        %v1672 = vpop.permute.xlu0 %1671
        %1673 = vrot.lane.b32.xlu0 %v1653, 113
        %v1674 = vpop.permute.xlu0 %1673
        %1675 = vrot.lane.b32.xlu0 %v1654, 113
        %v1676 = vpop.permute.xlu0 %1675
        %1677 = vrot.lane.b32.xlu0 %v1655, 113
        %v1678 = vpop.permute.xlu0 %1677
        %1679 = vrot.lane.b32.xlu0 %v1656, 113
        %v1680 = vpop.permute.xlu0 %1679
        %v1689 = vadd.f32 %v242, %v1666
        %v1690 = vadd.f32 %v243, %v1668
        %v1691 = vadd.f32 %v244, %v1670
        %v1692 = vadd.f32 %v245, %v1672
        %v1693 = vadd.f32 %v246, %v1674
        %v1694 = vadd.f32 %v247, %v1676
        %v1695 = vadd.f32 %v248, %v1678
        %v1696 = vadd.f32 %v249, %v1680
        %1697 = vrot.lane.b32.xlu0 %v1649, 127
        %v1698 = vpop.permute.xlu0 %1697
        %1699 = vrot.lane.b32.xlu0 %v1650, 127
        %v1700 = vpop.permute.xlu0 %1699
        %1701 = vrot.lane.b32.xlu0 %v1651, 127
        %v1702 = vpop.permute.xlu0 %1701
        %1703 = vrot.lane.b32.xlu0 %v1652, 127
        %v1704 = vpop.permute.xlu0 %1703
        %1705 = vrot.lane.b32.xlu0 %v1653, 127
        %v1706 = vpop.permute.xlu0 %1705
        %1707 = vrot.lane.b32.xlu0 %v1654, 127
        %v1708 = vpop.permute.xlu0 %1707
        %1709 = vrot.lane.b32.xlu0 %v1655, 127
        %v1710 = vpop.permute.xlu0 %1709
        %1711 = vrot.lane.b32.xlu0 %v1656, 127
        %v1712 = vpop.permute.xlu0 %1711
        %v1721 = vadd.f32 %v1689, %v1698
        %v1722 = vadd.f32 %v1690, %v1700
        %v1723 = vadd.f32 %v1691, %v1702
        %v1724 = vadd.f32 %v1692, %v1704
        %v1725 = vadd.f32 %v1693, %v1706
        %v1726 = vadd.f32 %v1694, %v1708
        %v1727 = vadd.f32 %v1695, %v1710
        %v1728 = vadd.f32 %v1696, %v1712
        %v1729 = vmul.f32 %v242, 2.0
        %v1730 = vmul.f32 %v243, 2.0
        %v1731 = vmul.f32 %v244, 2.0
        %v1732 = vmul.f32 %v245, 2.0
        %v1733 = vmul.f32 %v246, 2.0
        %v1734 = vmul.f32 %v247, 2.0
        %v1735 = vmul.f32 %v248, 2.0
        %v1736 = vmul.f32 %v249, 2.0
        %1745 = vrot.lane.b32.xlu0 %v1729, 127
        %v1746 = vpop.permute.xlu0 %1745
        %1747 = vrot.lane.b32.xlu0 %v1730, 127
        %v1748 = vpop.permute.xlu0 %1747
        %1749 = vrot.lane.b32.xlu0 %v1731, 127
        %v1750 = vpop.permute.xlu0 %1749
        %1751 = vrot.lane.b32.xlu0 %v1732, 127
        %v1752 = vpop.permute.xlu0 %1751
        %1753 = vrot.lane.b32.xlu0 %v1733, 127
        %v1754 = vpop.permute.xlu0 %1753
        %1755 = vrot.lane.b32.xlu0 %v1734, 127
        %v1756 = vpop.permute.xlu0 %1755
        %1757 = vrot.lane.b32.xlu0 %v1735, 127
        %v1758 = vpop.permute.xlu0 %1757
        %1759 = vrot.lane.b32.xlu0 %v1736, 127
        %v1760 = vpop.permute.xlu0 %1759
        %v1769 = vadd.f32 %v242, %v1746
        %v1770 = vadd.f32 %v243, %v1748
        %v1771 = vadd.f32 %v244, %v1750
        %v1772 = vadd.f32 %v245, %v1752
        %v1773 = vadd.f32 %v246, %v1754
        %v1774 = vadd.f32 %v247, %v1756
        %v1775 = vadd.f32 %v248, %v1758
        %v1776 = vadd.f32 %v249, %v1760
        %1777 = vrot.lane.b32.xlu0 %v1729, 1
        %v1778 = vpop.permute.xlu0 %1777
        %1779 = vrot.lane.b32.xlu0 %v1730, 1
        %v1780 = vpop.permute.xlu0 %1779
        %1781 = vrot.lane.b32.xlu0 %v1731, 1
        %v1782 = vpop.permute.xlu0 %1781
        %1783 = vrot.lane.b32.xlu0 %v1732, 1
        %v1784 = vpop.permute.xlu0 %1783
        %1785 = vrot.lane.b32.xlu0 %v1733, 1
        %v1786 = vpop.permute.xlu0 %1785
        %1787 = vrot.lane.b32.xlu0 %v1734, 1
        %v1788 = vpop.permute.xlu0 %1787
        %1789 = vrot.lane.b32.xlu0 %v1735, 1
        %v1790 = vpop.permute.xlu0 %1789
        %1791 = vrot.lane.b32.xlu0 %v1736, 1
        %v1792 = vpop.permute.xlu0 %1791
        %v1801 = vadd.f32 %v242, %v1778
        %v1802 = vadd.f32 %v243, %v1780
        %v1803 = vadd.f32 %v244, %v1782
        %v1804 = vadd.f32 %v245, %v1784
        %v1805 = vadd.f32 %v246, %v1786
        %v1806 = vadd.f32 %v247, %v1788
        %v1807 = vadd.f32 %v248, %v1790
        %v1808 = vadd.f32 %v249, %v1792
        %1810 = vset.pattern.permute.xlu0 0
        %1811 = vperm.xlu0 %1810, %v1769
        %v1812 = vpop.permute.xlu0 %1811
        %1815 = vset.pattern.permute.xlu0 0
        %1816 = vperm.xlu0 %1815, %v1770
        %v1817 = vpop.permute.xlu0 %1816
        %1820 = vset.pattern.permute.xlu0 0
        %1821 = vperm.xlu0 %1820, %v1771
        %v1822 = vpop.permute.xlu0 %1821
        %1825 = vset.pattern.permute.xlu0 0
        %1826 = vperm.xlu0 %1825, %v1772
        %v1827 = vpop.permute.xlu0 %1826
        %1830 = vset.pattern.permute.xlu0 0
        %1831 = vperm.xlu0 %1830, %v1773
        %v1832 = vpop.permute.xlu0 %1831
        %1835 = vset.pattern.permute.xlu0 0
        %1836 = vperm.xlu0 %1835, %v1774
        %v1837 = vpop.permute.xlu0 %1836
        %1840 = vset.pattern.permute.xlu0 0
        %1841 = vperm.xlu0 %1840, %v1775
        %v1842 = vpop.permute.xlu0 %1841
        %1845 = vset.pattern.permute.xlu0 0
        %1846 = vperm.xlu0 %1845, %v1776
        %v1847 = vpop.permute.xlu0 %1846
        %v1849 = vsel %vm460, %v1812, %v1721
        %v1850 = vsel %vm460, %v1817, %v1722
        %v1851 = vsel %vm460, %v1822, %v1723
        %v1852 = vsel %vm460, %v1827, %v1724
        %v1853 = vsel %vm460, %v1832, %v1725
        %v1854 = vsel %vm460, %v1837, %v1726
        %v1855 = vsel %vm460, %v1842, %v1727
        %v1856 = vsel %vm460, %v1847, %v1728
        %1858 = vset.pattern.permute.xlu0 15
        %1859 = vperm.xlu0 %1858, %v1801
        %v1860 = vpop.permute.xlu0 %1859
        %1863 = vset.pattern.permute.xlu0 15
        %1864 = vperm.xlu0 %1863, %v1802
        %v1865 = vpop.permute.xlu0 %1864
        %1868 = vset.pattern.permute.xlu0 15
        %1869 = vperm.xlu0 %1868, %v1803
        %v1870 = vpop.permute.xlu0 %1869
        %1873 = vset.pattern.permute.xlu0 15
        %1874 = vperm.xlu0 %1873, %v1804
        %v1875 = vpop.permute.xlu0 %1874
        %1878 = vset.pattern.permute.xlu0 15
        %1879 = vperm.xlu0 %1878, %v1805
        %v1880 = vpop.permute.xlu0 %1879
        %1883 = vset.pattern.permute.xlu0 15
        %1884 = vperm.xlu0 %1883, %v1806
        %v1885 = vpop.permute.xlu0 %1884
        %1888 = vset.pattern.permute.xlu0 15
        %1889 = vperm.xlu0 %1888, %v1807
        %v1890 = vpop.permute.xlu0 %1889
        %1893 = vset.pattern.permute.xlu0 15
        %1894 = vperm.xlu0 %1893, %v1808
        %v1895 = vpop.permute.xlu0 %1894
        %v1897 = vsel %vm510, %v1860, %v1849
        %v1898 = vsel %vm510, %v1865, %v1850
        %v1899 = vsel %vm510, %v1870, %v1851
        %v1900 = vsel %vm510, %v1875, %v1852
        %v1901 = vsel %vm510, %v1880, %v1853
        %v1902 = vsel %vm510, %v1885, %v1854
        %v1903 = vsel %vm510, %v1890, %v1855
        %v1904 = vsel %vm510, %v1895, %v1856
        %v1905 = vrot.slane %v1897, 7
        %v1906 = vrot.slane %v1899, 7
        %v1907 = vrot.slane %v1901, 7
        %v1908 = vrot.slane %v1903, 7
        %v1909 = vrot.slane %v1898, 7
        %v1910 = vrot.slane %v1900, 7
        %v1911 = vrot.slane %v1902, 7
        %v1912 = vrot.slane %v1904, 7
        %v1913 = vsel %vm567, %v1905, %v1909
        %v1914 = vsel %vm567, %v1906, %v1910
        %v1915 = vsel %vm567, %v1907, %v1911
        %v1916 = vsel %vm567, %v1908, %v1912
        %v1917 = vsel %vm567, %v1909, %v1905
        %v1918 = vsel %vm567, %v1910, %v1906
        %v1919 = vsel %vm567, %v1911, %v1907
        %v1920 = vsel %vm567, %v1912, %v1908
        %v1921 = vadd.f32 %v1897, %v1917
        %v1922 = vadd.f32 %v1898, %v1913
        %v1923 = vadd.f32 %v1899, %v1918
        %v1924 = vadd.f32 %v1900, %v1914
        %v1925 = vadd.f32 %v1901, %v1919
        %v1926 = vadd.f32 %v1902, %v1915
        %v1927 = vadd.f32 %v1903, %v1920
        %v1928 = vadd.f32 %v1904, %v1916
        %v1929 = vrot.slane %v1897, 1
        %v1930 = vrot.slane %v1899, 1
        %v1931 = vrot.slane %v1901, 1
        %v1932 = vrot.slane %v1903, 1
        %v1933 = vrot.slane %v1898, 1
        %v1934 = vrot.slane %v1900, 1
        %v1935 = vrot.slane %v1902, 1
        %v1936 = vrot.slane %v1904, 1
        %v1937 = vsel %vm592, %v1929, %v1933
        %v1938 = vsel %vm592, %v1930, %v1934
        %v1939 = vsel %vm592, %v1931, %v1935
        %v1940 = vsel %vm592, %v1932, %v1936
        %v1941 = vsel %vm592, %v1933, %v1929
        %v1942 = vsel %vm592, %v1934, %v1930
        %v1943 = vsel %vm592, %v1935, %v1931
        %v1944 = vsel %vm592, %v1936, %v1932
        %v1945 = vadd.f32 %v1921, %v1937
        %v1946 = vadd.f32 %v1922, %v1941
        %v1947 = vadd.f32 %v1923, %v1938
        %v1948 = vadd.f32 %v1924, %v1942
        %v1949 = vadd.f32 %v1925, %v1939
        %v1950 = vadd.f32 %v1926, %v1943
        %v1951 = vadd.f32 %v1927, %v1940
        %v1952 = vadd.f32 %v1928, %v1944
        %v1953 = vmul.f32 %v1897, 2.0
        %v1954 = vmul.f32 %v1899, 2.0
        %v1955 = vmul.f32 %v1901, 2.0
        %v1956 = vmul.f32 %v1903, 2.0
        %v1961 = vrot.slane %v1953, 1
        %v1962 = vrot.slane %v1954, 1
        %v1963 = vrot.slane %v1955, 1
        %v1964 = vrot.slane %v1956, 1
        %v1969 = vadd.f32 %v1897, %v1961
        %v1970 = vadd.f32 %v1899, %v1962
        %v1971 = vadd.f32 %v1901, %v1963
        %v1972 = vadd.f32 %v1903, %v1964
        %v1973 = vmul.f32 %v1898, 2.0
        %v1974 = vmul.f32 %v1900, 2.0
        %v1975 = vmul.f32 %v1902, 2.0
        %v1976 = vmul.f32 %v1904, 2.0
        %v1981 = vrot.slane %v1973, 7
        %v1982 = vrot.slane %v1974, 7
        %v1983 = vrot.slane %v1975, 7
        %v1984 = vrot.slane %v1976, 7
        %v1989 = vadd.f32 %v1898, %v1981
        %v1990 = vadd.f32 %v1900, %v1982
        %v1991 = vadd.f32 %v1902, %v1983
        %v1992 = vadd.f32 %v1904, %v1984
        %v1993 = vlaneseq
        %v1994 = vshrl.u32 %v1993, 7
        %v1995 = vsub.s32 0, %v1994
        %v1996 = vrot.slane %v1969, %v1995
        %v1997 = vlaneseq
        %v1998 = vshrl.u32 %v1997, 7
        %v1999 = vsub.s32 0, %v1998
        %v2000 = vrot.slane %v1970, %v1999
        %v2001 = vlaneseq
        %v2002 = vshrl.u32 %v2001, 7
        %v2003 = vsub.s32 0, %v2002
        %v2004 = vrot.slane %v1971, %v2003
        %v2005 = vlaneseq
        %v2006 = vshrl.u32 %v2005, 7
        %v2007 = vsub.s32 0, %v2006
        %v2008 = vrot.slane %v1972, %v2007
        %v2009 = vsel %vm651, %v1996, %v1945
        %v2010 = vsel %vm652, %v1996, %v1946
        %v2011 = vsel %vm651, %v2000, %v1947
        %v2012 = vsel %vm652, %v2000, %v1948
        %v2013 = vsel %vm651, %v2004, %v1949
        %v2014 = vsel %vm652, %v2004, %v1950
        %v2015 = vsel %vm651, %v2008, %v1951
        %v2016 = vsel %vm652, %v2008, %v1952
        %v2017 = vlaneseq
        %v2018 = vshrl.u32 %v2017, 7
        %v2019 = vsub.s32 7, %v2018
        %v2020 = vrot.slane %v1989, %v2019
        %v2021 = vlaneseq
        %v2022 = vshrl.u32 %v2021, 7
        %v2023 = vsub.s32 7, %v2022
        %v2024 = vrot.slane %v1990, %v2023
        %v2025 = vlaneseq
        %v2026 = vshrl.u32 %v2025, 7
        %v2027 = vsub.s32 7, %v2026
        %v2028 = vrot.slane %v1991, %v2027
        %v2029 = vlaneseq
        %v2030 = vshrl.u32 %v2029, 7
        %v2031 = vsub.s32 7, %v2030
        %v2032 = vrot.slane %v1992, %v2031
        %v2033 = vsel %vm679, %v2020, %v2009
        %v2034 = vsel %vm680, %v2020, %v2010
        %v2035 = vsel %vm679, %v2024, %v2011
        %v2036 = vsel %vm680, %v2024, %v2012
        %v2037 = vsel %vm679, %v2028, %v2013
        %v2038 = vsel %vm680, %v2028, %v2014
        %v2039 = vsel %vm679, %v2032, %v2015
        %v2040 = vsel %vm680, %v2032, %v2016
        %v2041 = vmul.f32 %v2033, 0.11111111
        %v2042 = vmul.f32 %v2034, 0.11111111
        %v2043 = vmul.f32 %v2035, 0.11111111
        %v2044 = vmul.f32 %v2036, 0.11111111
        %v2045 = vmul.f32 %v2037, 0.11111111
        %v2046 = vmul.f32 %v2038, 0.11111111
        %v2047 = vmul.f32 %v2039, 0.11111111
        %v2048 = vmul.f32 %v2040, 0.11111111
        %v2049 = vmul.f32 %v1145, %v1145
        %v2050 = vmul.f32 %v1146, %v1146
        %v2051 = vmul.f32 %v1147, %v1147
        %v2052 = vmul.f32 %v1148, %v1148
        %v2053 = vmul.f32 %v1149, %v1149
        %v2054 = vmul.f32 %v1150, %v1150
        %v2055 = vmul.f32 %v1151, %v1151
        %v2056 = vmul.f32 %v1152, %v1152
        %v2057 = vsub.f32 %v2041, %v2049
        %v2058 = vsub.f32 %v2042, %v2050
        %v2059 = vsub.f32 %v2043, %v2051
        %v2060 = vsub.f32 %v2044, %v2052
        %v2061 = vsub.f32 %v2045, %v2053
        %v2062 = vsub.f32 %v2046, %v2054
        %v2063 = vsub.f32 %v2047, %v2055
        %v2064 = vsub.f32 %v2048, %v2056
        %2065 = vrot.lane.b32.xlu0 %v250, 16
        %v2066 = vpop.permute.xlu0 %2065
        %v2067 = vsel %vm258, %v2066, %v250
        %2068 = vrot.lane.b32.xlu0 %v251, 16
        %v2069 = vpop.permute.xlu0 %2068
        %v2070 = vsel %vm258, %v2069, %v251
        %2071 = vrot.lane.b32.xlu0 %v252, 16
        %v2072 = vpop.permute.xlu0 %2071
        %v2073 = vsel %vm258, %v2072, %v252
        %2074 = vrot.lane.b32.xlu0 %v253, 16
        %v2075 = vpop.permute.xlu0 %2074
        %v2076 = vsel %vm258, %v2075, %v253
        %2077 = vrot.lane.b32.xlu0 %v254, 16
        %v2078 = vpop.permute.xlu0 %2077
        %v2079 = vsel %vm258, %v2078, %v254
        %2080 = vrot.lane.b32.xlu0 %v255, 16
        %v2081 = vpop.permute.xlu0 %2080
        %v2082 = vsel %vm258, %v2081, %v255
        %2083 = vrot.lane.b32.xlu0 %v256, 16
        %v2084 = vpop.permute.xlu0 %2083
        %v2085 = vsel %vm258, %v2084, %v256
        %2086 = vrot.lane.b32.xlu0 %v257, 16
        %v2087 = vpop.permute.xlu0 %2086
        %v2088 = vsel %vm258, %v2087, %v257
        %2089 = vrot.lane.b32.xlu0 %v2067, 16
        %v2090 = vpop.permute.xlu0 %2089
        %2091 = vrot.lane.b32.xlu0 %v2070, 16
        %v2092 = vpop.permute.xlu0 %2091
        %2093 = vrot.lane.b32.xlu0 %v2073, 16
        %v2094 = vpop.permute.xlu0 %2093
        %2095 = vrot.lane.b32.xlu0 %v2076, 16
        %v2096 = vpop.permute.xlu0 %2095
        %2097 = vrot.lane.b32.xlu0 %v2079, 16
        %v2098 = vpop.permute.xlu0 %2097
        %2099 = vrot.lane.b32.xlu0 %v2082, 16
        %v2100 = vpop.permute.xlu0 %2099
        %2101 = vrot.lane.b32.xlu0 %v2085, 16
        %v2102 = vpop.permute.xlu0 %2101
        %2103 = vrot.lane.b32.xlu0 %v2088, 16
        %v2104 = vpop.permute.xlu0 %2103
        %v2105 = vsel %vm258, %v2090, %v250
        %v2106 = vsel %vm258, %v2092, %v251
        %v2107 = vsel %vm258, %v2094, %v252
        %v2108 = vsel %vm258, %v2096, %v253
        %v2109 = vsel %vm258, %v2098, %v254
        %v2110 = vsel %vm258, %v2100, %v255
        %v2111 = vsel %vm258, %v2102, %v256
        %v2112 = vsel %vm258, %v2104, %v257
        %2121 = vrot.lane.b32.xlu0 %v2105, 113
        %v2122 = vpop.permute.xlu0 %2121
        %2123 = vrot.lane.b32.xlu0 %v2106, 113
        %v2124 = vpop.permute.xlu0 %2123
        %2125 = vrot.lane.b32.xlu0 %v2107, 113
        %v2126 = vpop.permute.xlu0 %2125
        %2127 = vrot.lane.b32.xlu0 %v2108, 113
        %v2128 = vpop.permute.xlu0 %2127
        %2129 = vrot.lane.b32.xlu0 %v2109, 113
        %v2130 = vpop.permute.xlu0 %2129
        %2131 = vrot.lane.b32.xlu0 %v2110, 113
        %v2132 = vpop.permute.xlu0 %2131
        %2133 = vrot.lane.b32.xlu0 %v2111, 113
        %v2134 = vpop.permute.xlu0 %2133
        %2135 = vrot.lane.b32.xlu0 %v2112, 113
        %v2136 = vpop.permute.xlu0 %2135
        %v2145 = vadd.f32 %v250, %v2122
        %v2146 = vadd.f32 %v251, %v2124
        %v2147 = vadd.f32 %v252, %v2126
        %v2148 = vadd.f32 %v253, %v2128
        %v2149 = vadd.f32 %v254, %v2130
        %v2150 = vadd.f32 %v255, %v2132
        %v2151 = vadd.f32 %v256, %v2134
        %v2152 = vadd.f32 %v257, %v2136
        %2153 = vrot.lane.b32.xlu0 %v2105, 127
        %v2154 = vpop.permute.xlu0 %2153
        %2155 = vrot.lane.b32.xlu0 %v2106, 127
        %v2156 = vpop.permute.xlu0 %2155
        %2157 = vrot.lane.b32.xlu0 %v2107, 127
        %v2158 = vpop.permute.xlu0 %2157
        %2159 = vrot.lane.b32.xlu0 %v2108, 127
        %v2160 = vpop.permute.xlu0 %2159
        %2161 = vrot.lane.b32.xlu0 %v2109, 127
        %v2162 = vpop.permute.xlu0 %2161
        %2163 = vrot.lane.b32.xlu0 %v2110, 127
        %v2164 = vpop.permute.xlu0 %2163
        %2165 = vrot.lane.b32.xlu0 %v2111, 127
        %v2166 = vpop.permute.xlu0 %2165
        %2167 = vrot.lane.b32.xlu0 %v2112, 127
        %v2168 = vpop.permute.xlu0 %2167
        %v2177 = vadd.f32 %v2145, %v2154
        %v2178 = vadd.f32 %v2146, %v2156
        %v2179 = vadd.f32 %v2147, %v2158
        %v2180 = vadd.f32 %v2148, %v2160
        %v2181 = vadd.f32 %v2149, %v2162
        %v2182 = vadd.f32 %v2150, %v2164
        %v2183 = vadd.f32 %v2151, %v2166
        %v2184 = vadd.f32 %v2152, %v2168
        %v2185 = vmul.f32 %v250, 2.0
        %v2186 = vmul.f32 %v251, 2.0
        %v2187 = vmul.f32 %v252, 2.0
        %v2188 = vmul.f32 %v253, 2.0
        %v2189 = vmul.f32 %v254, 2.0
        %v2190 = vmul.f32 %v255, 2.0
        %v2191 = vmul.f32 %v256, 2.0
        %v2192 = vmul.f32 %v257, 2.0
        %2201 = vrot.lane.b32.xlu0 %v2185, 127
        %v2202 = vpop.permute.xlu0 %2201
        %2203 = vrot.lane.b32.xlu0 %v2186, 127
        %v2204 = vpop.permute.xlu0 %2203
        %2205 = vrot.lane.b32.xlu0 %v2187, 127
        %v2206 = vpop.permute.xlu0 %2205
        %2207 = vrot.lane.b32.xlu0 %v2188, 127
        %v2208 = vpop.permute.xlu0 %2207
        %2209 = vrot.lane.b32.xlu0 %v2189, 127
        %v2210 = vpop.permute.xlu0 %2209
        %2211 = vrot.lane.b32.xlu0 %v2190, 127
        %v2212 = vpop.permute.xlu0 %2211
        %2213 = vrot.lane.b32.xlu0 %v2191, 127
        %v2214 = vpop.permute.xlu0 %2213
        %2215 = vrot.lane.b32.xlu0 %v2192, 127
        %v2216 = vpop.permute.xlu0 %2215
        %v2225 = vadd.f32 %v250, %v2202
        %v2226 = vadd.f32 %v251, %v2204
        %v2227 = vadd.f32 %v252, %v2206
        %v2228 = vadd.f32 %v253, %v2208
        %v2229 = vadd.f32 %v254, %v2210
        %v2230 = vadd.f32 %v255, %v2212
        %v2231 = vadd.f32 %v256, %v2214
        %v2232 = vadd.f32 %v257, %v2216
        %2233 = vrot.lane.b32.xlu0 %v2185, 1
        %v2234 = vpop.permute.xlu0 %2233
        %2235 = vrot.lane.b32.xlu0 %v2186, 1
        %v2236 = vpop.permute.xlu0 %2235
        %2237 = vrot.lane.b32.xlu0 %v2187, 1
        %v2238 = vpop.permute.xlu0 %2237
        %2239 = vrot.lane.b32.xlu0 %v2188, 1
        %v2240 = vpop.permute.xlu0 %2239
        %2241 = vrot.lane.b32.xlu0 %v2189, 1
        %v2242 = vpop.permute.xlu0 %2241
        %2243 = vrot.lane.b32.xlu0 %v2190, 1
        %v2244 = vpop.permute.xlu0 %2243
        %2245 = vrot.lane.b32.xlu0 %v2191, 1
        %v2246 = vpop.permute.xlu0 %2245
        %2247 = vrot.lane.b32.xlu0 %v2192, 1
        %v2248 = vpop.permute.xlu0 %2247
        %v2257 = vadd.f32 %v250, %v2234
        %v2258 = vadd.f32 %v251, %v2236
        %v2259 = vadd.f32 %v252, %v2238
        %v2260 = vadd.f32 %v253, %v2240
        %v2261 = vadd.f32 %v254, %v2242
        %v2262 = vadd.f32 %v255, %v2244
        %v2263 = vadd.f32 %v256, %v2246
        %v2264 = vadd.f32 %v257, %v2248
        %2266 = vset.pattern.permute.xlu0 0
        %2267 = vperm.xlu0 %2266, %v2225
        %v2268 = vpop.permute.xlu0 %2267
        %2271 = vset.pattern.permute.xlu0 0
        %2272 = vperm.xlu0 %2271, %v2226
        %v2273 = vpop.permute.xlu0 %2272
        %2276 = vset.pattern.permute.xlu0 0
        %2277 = vperm.xlu0 %2276, %v2227
        %v2278 = vpop.permute.xlu0 %2277
        %2281 = vset.pattern.permute.xlu0 0
        %2282 = vperm.xlu0 %2281, %v2228
        %v2283 = vpop.permute.xlu0 %2282
        %2286 = vset.pattern.permute.xlu0 0
        %2287 = vperm.xlu0 %2286, %v2229
        %v2288 = vpop.permute.xlu0 %2287
        %2291 = vset.pattern.permute.xlu0 0
        %2292 = vperm.xlu0 %2291, %v2230
        %v2293 = vpop.permute.xlu0 %2292
        %2296 = vset.pattern.permute.xlu0 0
        %2297 = vperm.xlu0 %2296, %v2231
        %v2298 = vpop.permute.xlu0 %2297
        %2301 = vset.pattern.permute.xlu0 0
        %2302 = vperm.xlu0 %2301, %v2232
        %v2303 = vpop.permute.xlu0 %2302
        %v2305 = vsel %vm460, %v2268, %v2177
        %v2306 = vsel %vm460, %v2273, %v2178
        %v2307 = vsel %vm460, %v2278, %v2179
        %v2308 = vsel %vm460, %v2283, %v2180
        %v2309 = vsel %vm460, %v2288, %v2181
        %v2310 = vsel %vm460, %v2293, %v2182
        %v2311 = vsel %vm460, %v2298, %v2183
        %v2312 = vsel %vm460, %v2303, %v2184
        %2314 = vset.pattern.permute.xlu0 15
        %2315 = vperm.xlu0 %2314, %v2257
        %v2316 = vpop.permute.xlu0 %2315
        %2319 = vset.pattern.permute.xlu0 15
        %2320 = vperm.xlu0 %2319, %v2258
        %v2321 = vpop.permute.xlu0 %2320
        %2324 = vset.pattern.permute.xlu0 15
        %2325 = vperm.xlu0 %2324, %v2259
        %v2326 = vpop.permute.xlu0 %2325
        %2329 = vset.pattern.permute.xlu0 15
        %2330 = vperm.xlu0 %2329, %v2260
        %v2331 = vpop.permute.xlu0 %2330
        %2334 = vset.pattern.permute.xlu0 15
        %2335 = vperm.xlu0 %2334, %v2261
        %v2336 = vpop.permute.xlu0 %2335
        %2339 = vset.pattern.permute.xlu0 15
        %2340 = vperm.xlu0 %2339, %v2262
        %v2341 = vpop.permute.xlu0 %2340
        %2344 = vset.pattern.permute.xlu0 15
        %2345 = vperm.xlu0 %2344, %v2263
        %v2346 = vpop.permute.xlu0 %2345
        %2349 = vset.pattern.permute.xlu0 15
        %2350 = vperm.xlu0 %2349, %v2264
        %v2351 = vpop.permute.xlu0 %2350
        %v2353 = vsel %vm510, %v2316, %v2305
        %v2354 = vsel %vm510, %v2321, %v2306
        %v2355 = vsel %vm510, %v2326, %v2307
        %v2356 = vsel %vm510, %v2331, %v2308
        %v2357 = vsel %vm510, %v2336, %v2309
        %v2358 = vsel %vm510, %v2341, %v2310
        %v2359 = vsel %vm510, %v2346, %v2311
        %v2360 = vsel %vm510, %v2351, %v2312
        %v2361 = vrot.slane %v2353, 7
        %v2362 = vrot.slane %v2355, 7
        %v2363 = vrot.slane %v2357, 7
        %v2364 = vrot.slane %v2359, 7
        %v2365 = vrot.slane %v2354, 7
        %v2366 = vrot.slane %v2356, 7
        %v2367 = vrot.slane %v2358, 7
        %v2368 = vrot.slane %v2360, 7
        %v2369 = vsel %vm567, %v2361, %v2365
        %v2370 = vsel %vm567, %v2362, %v2366
        %v2371 = vsel %vm567, %v2363, %v2367
        %v2372 = vsel %vm567, %v2364, %v2368
        %v2373 = vsel %vm567, %v2365, %v2361
        %v2374 = vsel %vm567, %v2366, %v2362
        %v2375 = vsel %vm567, %v2367, %v2363
        %v2376 = vsel %vm567, %v2368, %v2364
        %v2377 = vadd.f32 %v2353, %v2373
        %v2378 = vadd.f32 %v2354, %v2369
        %v2379 = vadd.f32 %v2355, %v2374
        %v2380 = vadd.f32 %v2356, %v2370
        %v2381 = vadd.f32 %v2357, %v2375
        %v2382 = vadd.f32 %v2358, %v2371
        %v2383 = vadd.f32 %v2359, %v2376
        %v2384 = vadd.f32 %v2360, %v2372
        %v2385 = vrot.slane %v2353, 1
        %v2386 = vrot.slane %v2355, 1
        %v2387 = vrot.slane %v2357, 1
        %v2388 = vrot.slane %v2359, 1
        %v2389 = vrot.slane %v2354, 1
        %v2390 = vrot.slane %v2356, 1
        %v2391 = vrot.slane %v2358, 1
        %v2392 = vrot.slane %v2360, 1
        %v2393 = vsel %vm592, %v2385, %v2389
        %v2394 = vsel %vm592, %v2386, %v2390
        %v2395 = vsel %vm592, %v2387, %v2391
        %v2396 = vsel %vm592, %v2388, %v2392
        %v2397 = vsel %vm592, %v2389, %v2385
        %v2398 = vsel %vm592, %v2390, %v2386
        %v2399 = vsel %vm592, %v2391, %v2387
        %v2400 = vsel %vm592, %v2392, %v2388
        %v2401 = vadd.f32 %v2377, %v2393
        %v2402 = vadd.f32 %v2378, %v2397
        %v2403 = vadd.f32 %v2379, %v2394
        %v2404 = vadd.f32 %v2380, %v2398
        %v2405 = vadd.f32 %v2381, %v2395
        %v2406 = vadd.f32 %v2382, %v2399
        %v2407 = vadd.f32 %v2383, %v2396
        %v2408 = vadd.f32 %v2384, %v2400
        %v2409 = vmul.f32 %v2353, 2.0
        %v2410 = vmul.f32 %v2355, 2.0
        %v2411 = vmul.f32 %v2357, 2.0
        %v2412 = vmul.f32 %v2359, 2.0
        %v2417 = vrot.slane %v2409, 1
        %v2418 = vrot.slane %v2410, 1
        %v2419 = vrot.slane %v2411, 1
        %v2420 = vrot.slane %v2412, 1
        %v2425 = vadd.f32 %v2353, %v2417
        %v2426 = vadd.f32 %v2355, %v2418
        %v2427 = vadd.f32 %v2357, %v2419
        %v2428 = vadd.f32 %v2359, %v2420
        %v2429 = vmul.f32 %v2354, 2.0
        %v2430 = vmul.f32 %v2356, 2.0
        %v2431 = vmul.f32 %v2358, 2.0
        %v2432 = vmul.f32 %v2360, 2.0
        %v2437 = vrot.slane %v2429, 7
        %v2438 = vrot.slane %v2430, 7
        %v2439 = vrot.slane %v2431, 7
        %v2440 = vrot.slane %v2432, 7
        %v2445 = vadd.f32 %v2354, %v2437
        %v2446 = vadd.f32 %v2356, %v2438
        %v2447 = vadd.f32 %v2358, %v2439
        %v2448 = vadd.f32 %v2360, %v2440
        %v2449 = vlaneseq
        %v2450 = vshrl.u32 %v2449, 7
        %v2451 = vsub.s32 0, %v2450
        %v2452 = vrot.slane %v2425, %v2451
        %v2453 = vlaneseq
        %v2454 = vshrl.u32 %v2453, 7
        %v2455 = vsub.s32 0, %v2454
        %v2456 = vrot.slane %v2426, %v2455
        %v2457 = vlaneseq
        %v2458 = vshrl.u32 %v2457, 7
        %v2459 = vsub.s32 0, %v2458
        %v2460 = vrot.slane %v2427, %v2459
        %v2461 = vlaneseq
        %v2462 = vshrl.u32 %v2461, 7
        %v2463 = vsub.s32 0, %v2462
        %v2464 = vrot.slane %v2428, %v2463
        %v2465 = vsel %vm651, %v2452, %v2401
        %v2466 = vsel %vm652, %v2452, %v2402
        %v2467 = vsel %vm651, %v2456, %v2403
        %v2468 = vsel %vm652, %v2456, %v2404
        %v2469 = vsel %vm651, %v2460, %v2405
        %v2470 = vsel %vm652, %v2460, %v2406
        %v2471 = vsel %vm651, %v2464, %v2407
        %v2472 = vsel %vm652, %v2464, %v2408
        %v2473 = vlaneseq
        %v2474 = vshrl.u32 %v2473, 7
        %v2475 = vsub.s32 7, %v2474
        %v2476 = vrot.slane %v2445, %v2475
        %v2477 = vlaneseq
        %v2478 = vshrl.u32 %v2477, 7
        %v2479 = vsub.s32 7, %v2478
        %v2480 = vrot.slane %v2446, %v2479
        %v2481 = vlaneseq
        %v2482 = vshrl.u32 %v2481, 7
        %v2483 = vsub.s32 7, %v2482
        %v2484 = vrot.slane %v2447, %v2483
        %v2485 = vlaneseq
        %v2486 = vshrl.u32 %v2485, 7
        %v2487 = vsub.s32 7, %v2486
        %v2488 = vrot.slane %v2448, %v2487
        %v2489 = vsel %vm679, %v2476, %v2465
        %v2490 = vsel %vm680, %v2476, %v2466
        %v2491 = vsel %vm679, %v2480, %v2467
        %v2492 = vsel %vm680, %v2480, %v2468
        %v2493 = vsel %vm679, %v2484, %v2469
        %v2494 = vsel %vm680, %v2484, %v2470
        %v2495 = vsel %vm679, %v2488, %v2471
        %v2496 = vsel %vm680, %v2488, %v2472
        %v2497 = vmul.f32 %v2489, 0.11111111
        %v2498 = vmul.f32 %v2490, 0.11111111
        %v2499 = vmul.f32 %v2491, 0.11111111
        %v2500 = vmul.f32 %v2492, 0.11111111
        %v2501 = vmul.f32 %v2493, 0.11111111
        %v2502 = vmul.f32 %v2494, 0.11111111
        %v2503 = vmul.f32 %v2495, 0.11111111
        %v2504 = vmul.f32 %v2496, 0.11111111
        %v2505 = vmul.f32 %v705, %v1145
        %v2506 = vmul.f32 %v706, %v1146
        %v2507 = vmul.f32 %v707, %v1147
        %v2508 = vmul.f32 %v708, %v1148
        %v2509 = vmul.f32 %v709, %v1149
        %v2510 = vmul.f32 %v710, %v1150
        %v2511 = vmul.f32 %v711, %v1151
        %v2512 = vmul.f32 %v712, %v1152
        %v2513 = vsub.f32 %v2497, %v2505
        %v2514 = vsub.f32 %v2498, %v2506
        %v2515 = vsub.f32 %v2499, %v2507
        %v2516 = vsub.f32 %v2500, %v2508
        %v2517 = vsub.f32 %v2501, %v2509
        %v2518 = vsub.f32 %v2502, %v2510
        %v2519 = vsub.f32 %v2503, %v2511
        %v2520 = vsub.f32 %v2504, %v2512
        %v2521 = vmul.f32 %v705, 2.0
        %v2522 = vmul.f32 %v706, 2.0
        %v2523 = vmul.f32 %v707, 2.0
        %v2524 = vmul.f32 %v708, 2.0
        %v2525 = vmul.f32 %v709, 2.0
        %v2526 = vmul.f32 %v710, 2.0
        %v2527 = vmul.f32 %v711, 2.0
        %v2528 = vmul.f32 %v712, 2.0
        %v2529 = vmul.f32 %v2521, %v1145
        %v2530 = vmul.f32 %v2522, %v1146
        %v2531 = vmul.f32 %v2523, %v1147
        %v2532 = vmul.f32 %v2524, %v1148
        %v2533 = vmul.f32 %v2525, %v1149
        %v2534 = vmul.f32 %v2526, %v1150
        %v2535 = vmul.f32 %v2527, %v1151
        %v2536 = vmul.f32 %v2528, %v1152
        %v2537 = vadd.f32 %v2529, 0.0001
        %v2538 = vadd.f32 %v2530, 0.0001
        %v2539 = vadd.f32 %v2531, 0.0001
        %v2540 = vadd.f32 %v2532, 0.0001
        %v2541 = vadd.f32 %v2533, 0.0001
        %v2542 = vadd.f32 %v2534, 0.0001
        %v2543 = vadd.f32 %v2535, 0.0001
        %v2544 = vadd.f32 %v2536, 0.0001
        %v2545 = vmul.f32 %v2513, 2.0
        %v2546 = vmul.f32 %v2514, 2.0
        %v2547 = vmul.f32 %v2515, 2.0
        %v2548 = vmul.f32 %v2516, 2.0
        %v2549 = vmul.f32 %v2517, 2.0
        %v2550 = vmul.f32 %v2518, 2.0
        %v2551 = vmul.f32 %v2519, 2.0
        %v2552 = vmul.f32 %v2520, 2.0
        %v2553 = vadd.f32 %v2545, 0.0009
        %v2554 = vadd.f32 %v2546, 0.0009
        %v2555 = vadd.f32 %v2547, 0.0009
        %v2556 = vadd.f32 %v2548, 0.0009
        %v2557 = vadd.f32 %v2549, 0.0009
        %v2558 = vadd.f32 %v2550, 0.0009
        %v2559 = vadd.f32 %v2551, 0.0009
        %v2560 = vadd.f32 %v2552, 0.0009
        %v2561 = vmul.f32 %v2537, %v2553
        %v2562 = vmul.f32 %v2538, %v2554
        %v2563 = vmul.f32 %v2539, %v2555
        %v2564 = vmul.f32 %v2540, %v2556
        %v2565 = vmul.f32 %v2541, %v2557
        %v2566 = vmul.f32 %v2542, %v2558
        %v2567 = vmul.f32 %v2543, %v2559
        %v2568 = vmul.f32 %v2544, %v2560
        %v2569 = vadd.f32 %v1593, %v2049
        %v2570 = vadd.f32 %v1594, %v2050
        %v2571 = vadd.f32 %v1595, %v2051
        %v2572 = vadd.f32 %v1596, %v2052
        %v2573 = vadd.f32 %v1597, %v2053
        %v2574 = vadd.f32 %v1598, %v2054
        %v2575 = vadd.f32 %v1599, %v2055
        %v2576 = vadd.f32 %v1600, %v2056
        %v2577 = vadd.f32 %v2569, 0.0001
        %v2578 = vadd.f32 %v2570, 0.0001
        %v2579 = vadd.f32 %v2571, 0.0001
        %v2580 = vadd.f32 %v2572, 0.0001
        %v2581 = vadd.f32 %v2573, 0.0001
        %v2582 = vadd.f32 %v2574, 0.0001
        %v2583 = vadd.f32 %v2575, 0.0001
        %v2584 = vadd.f32 %v2576, 0.0001
        %v2585 = vadd.f32 %v1601, %v2057
        %v2586 = vadd.f32 %v1602, %v2058
        %v2587 = vadd.f32 %v1603, %v2059
        %v2588 = vadd.f32 %v1604, %v2060
        %v2589 = vadd.f32 %v1605, %v2061
        %v2590 = vadd.f32 %v1606, %v2062
        %v2591 = vadd.f32 %v1607, %v2063
        %v2592 = vadd.f32 %v1608, %v2064
        %v2593 = vadd.f32 %v2585, 0.0009
        %v2594 = vadd.f32 %v2586, 0.0009
        %v2595 = vadd.f32 %v2587, 0.0009
        %v2596 = vadd.f32 %v2588, 0.0009
        %v2597 = vadd.f32 %v2589, 0.0009
        %v2598 = vadd.f32 %v2590, 0.0009
        %v2599 = vadd.f32 %v2591, 0.0009
        %v2600 = vadd.f32 %v2592, 0.0009
        %v2601 = vmul.f32 %v2577, %v2593
        %v2602 = vmul.f32 %v2578, %v2594
        %v2603 = vmul.f32 %v2579, %v2595
        %v2604 = vmul.f32 %v2580, %v2596
        %v2605 = vmul.f32 %v2581, %v2597
        %v2606 = vmul.f32 %v2582, %v2598
        %v2607 = vmul.f32 %v2583, %v2599
        %v2608 = vmul.f32 %v2584, %v2600
        %v2609 = vrcp.pop %v2601
        %v2610 = vrcp.pop %v2602
        %v2611 = vrcp.pop %v2603
        %v2612 = vrcp.pop %v2604
        %v2613 = vrcp.pop %v2605
        %v2614 = vrcp.pop %v2606
        %v2615 = vrcp.pop %v2607
        %v2616 = vrcp.pop %v2608
        %v2617 = vmul.f32 %v2601, %v2609
        %v2618 = vmul.f32 %v2602, %v2610
        %v2619 = vmul.f32 %v2603, %v2611
        %v2620 = vmul.f32 %v2604, %v2612
        %v2621 = vmul.f32 %v2605, %v2613
        %v2622 = vmul.f32 %v2606, %v2614
        %v2623 = vmul.f32 %v2607, %v2615
        %v2624 = vmul.f32 %v2608, %v2616
        %v2625 = vsub.f32 2.0, %v2617
        %v2626 = vsub.f32 2.0, %v2618
        %v2627 = vsub.f32 2.0, %v2619
        %v2628 = vsub.f32 2.0, %v2620
        %v2629 = vsub.f32 2.0, %v2621
        %v2630 = vsub.f32 2.0, %v2622
        %v2631 = vsub.f32 2.0, %v2623
        %v2632 = vsub.f32 2.0, %v2624
        %v2633 = vmul.f32 %v2609, %v2625
        %v2634 = vmul.f32 %v2610, %v2626
        %v2635 = vmul.f32 %v2611, %v2627
        %v2636 = vmul.f32 %v2612, %v2628
        %v2637 = vmul.f32 %v2613, %v2629
        %v2638 = vmul.f32 %v2614, %v2630
        %v2639 = vmul.f32 %v2615, %v2631
        %v2640 = vmul.f32 %v2616, %v2632
        %v2641 = vmul.f32 %v2561, %v2633
        %v2642 = vmul.f32 %v2562, %v2634
        %v2643 = vmul.f32 %v2563, %v2635
        %v2644 = vmul.f32 %v2564, %v2636
        %v2645 = vmul.f32 %v2565, %v2637
        %v2646 = vmul.f32 %v2566, %v2638
        %v2647 = vmul.f32 %v2567, %v2639
        %v2648 = vmul.f32 %v2568, %v2640
        %v2649 = vsub.f32 1.0, %v2641
        %v2650 = vsub.f32 1.0, %v2642
        %v2651 = vsub.f32 1.0, %v2643
        %v2652 = vsub.f32 1.0, %v2644
        %v2653 = vsub.f32 1.0, %v2645
        %v2654 = vsub.f32 1.0, %v2646
        %v2655 = vsub.f32 1.0, %v2647
        %v2656 = vsub.f32 1.0, %v2648
        %v2657 = vmul.f32 %v2649, 0.5
        %v2658 = vmul.f32 %v2650, 0.5
        %v2659 = vmul.f32 %v2651, 0.5
        %v2660 = vmul.f32 %v2652, 0.5
        %v2661 = vmul.f32 %v2653, 0.5
        %v2662 = vmul.f32 %v2654, 0.5
        %v2663 = vmul.f32 %v2655, 0.5
        %v2664 = vmul.f32 %v2656, 0.5
        %v2665 = vmax.f32 %v2657, 0.0
        %v2666 = vmax.f32 %v2658, 0.0
        %v2667 = vmax.f32 %v2659, 0.0
        %v2668 = vmax.f32 %v2660, 0.0
        %v2669 = vmax.f32 %v2661, 0.0
        %v2670 = vmax.f32 %v2662, 0.0
        %v2671 = vmax.f32 %v2663, 0.0
        %v2672 = vmax.f32 %v2664, 0.0
        %v2673 = vmin.f32 %v2665, 1.0
        %v2674 = vmin.f32 %v2666, 1.0
        %v2675 = vmin.f32 %v2667, 1.0
        %v2676 = vmin.f32 %v2668, 1.0
        %v2677 = vmin.f32 %v2669, 1.0
        %v2678 = vmin.f32 %v2670, 1.0
        %v2679 = vmin.f32 %v2671, 1.0
        %v2680 = vmin.f32 %v2672, 1.0
        %vm2681 = vcmask 130048
        %2682 = vst.msk [vmem:[%s203] sm:$0xff] %vm2681, %v2673
        %2683 = vst.msk [vmem:[%s203 + $0x8] sm:$0xff] %vm2681, %v2674
        %2684 = vst.msk [vmem:[%s203 + $0x10] sm:$0xff] %vm2681, %v2675
        %2685 = vst.msk [vmem:[%s203 + $0x18] sm:$0xff] %vm2681, %v2676
        %2686 = vst.msk [vmem:[%s203 + $0x20] sm:$0xff] %vm2681, %v2677
        %2687 = vst.msk [vmem:[%s203 + $0x28] sm:$0xff] %vm2681, %v2678
        %2688 = vst.msk [vmem:[%s203 + $0x30] sm:$0xff] %vm2681, %v2679
        %2689 = vst.msk [vmem:[%s203 + $0x38] sm:$0xff] %vm2681, %v2680
        %s2690 = sand.u32 %s82, 1
        %s2691 = scalar_lea.sflag [#allocation4], %s2690
        %s2692 = sand.u32 %s82, 1
        %s2693 = smul.addr %s2692, 64
        %s2694 = scalar_lea.vmem [#allocation7], %s2693
        // Predicated region
        $region37: #{ssim_pallas.1} parent=27 // pred_check
          %p2695 = pneg %p92
        $region38: #{ssim_pallas.1} parent=27 // pred_check_branch
          %2697 = sbr.rel (%p2695) target = $region40
        $region39: #{ssim_pallas.1} parent=27 // pred_region
          %s2698 = smul.u32 4, %s22
          %s2700 = ssub.s32 1024, 1024
          %2701 = vsyncadd %s2691, %s2700
          %s2702 = smul.addr %s2698, 2
          %s2703 = smul.addr %s2702, 128
          %s2704 = scalar_lea.hbm %s2, %s2703
          %s2705 = sshll.u32 %s2694, 4
          %s2706 = int_to_ptr.vmem [resolvable:$true] %s2705
          %2711 = dma.vmem_to_hbm [thread:$0]  %s2706, 1024, %s2704, %s2691, 128, 128, 8
        $region40: #{ssim_pallas.1} parent=27 // pred_fallthru
          _
      $region28: #{ssim_pallas.1} parent=5 // pred_fallthru
        _
      %p2712 = scmp.le.s32.totalorder 2, %s17
      // Predicated region
      $region41: #{ssim_pallas.1} parent=5 // pred_check
        %p2713 = pneg %p2712
      $region42: #{ssim_pallas.1} parent=5 // pred_check_branch
        %2715 = sbr.rel (%p2713) target = $region44
      $region43: #{ssim_pallas.1} parent=5 // pred_region
        %s2716 = ssub.s32 %s17, 2
        // Predicated region
        $region45: #{ssim_pallas.1} parent=43 // pred_check
          %p2717 = pneg %p98
        $region46: #{ssim_pallas.1} parent=43 // pred_check_branch
          %2719 = sbr.rel (%p2717) target = $region48
        $region47: #{ssim_pallas.1} parent=43 // pred_region
          %s2720 = sand.u32 %s83, 1
          %s2721 = scalar_lea.sflag [#allocation4], %s2720
          %s2722 = sand.u32 %s83, 1
          %s2723 = smul.addr %s2722, 64
          %s2724 = scalar_lea.vmem [#allocation7], %s2723
          %2725 = dma.done %s2721, 1024
        $region48: #{ssim_pallas.1} parent=43 // pred_fallthru
          _
      $region44: #{ssim_pallas.1} parent=5 // pred_fallthru
        _
    $region6: #{ssim_pallas.1} parent=1 // loop_footer
      %s21 = sadd.s32 1, %s17
    $region7: #{ssim_pallas.1} parent=1 // loop_footer_branch
      %16 = sbr.rel target = $region3
    $region8: #{ssim_pallas.1} parent=1 // loop_exit
      _
    %2726 = vsyncpa [#allocation3], 1
    %s2727 = scalar_lea.sflag [#allocation3], 1
    %2728 = vsyncpa %s2727, 1
    %2729 = vsyncpa [#allocation6], 1
    %s2730 = scalar_lea.sflag [#allocation6], 1
    %2731 = vsyncpa %s2730, 1
    %2732 = vsyncpa [#allocation4], 1
    %s2733 = scalar_lea.sflag [#allocation4], 1
    %2734 = vsyncpa %s2733, 1

</llo_original>
